<compile_context>
chip_gen: v7x
topology: tpu7x:2x2x1
jax: 0.10.0
libtpu: 0.0.40
codegen_flags: <defaults>
</compile_context>

<pallas_src>
import jax
import jax.numpy as jnp
from jax.experimental import pallas as pl
from jax.experimental.pallas import tpu as pltpu


def _adapter_mlp_kernel(x_ref, w1_ref, b1_ref, w2_ref, b2_ref, w3_ref, b3_ref,
                        mask_ref, out_ref):
    x = x_ref[0]                                          # (512, F)

    # Linear(512 -> 256) + ReLU  (channels-first: W1 @ X + b1)
    h1 = jnp.dot(w1_ref[...], x, preferred_element_type=jnp.float32)
    h1 = jnp.maximum(h1 + b1_ref[...], 0.0)               # (256, F)

    # Linear(256 -> 128) + ReLU
    h2 = jnp.dot(w2_ref[...], h1, preferred_element_type=jnp.float32)
    h2 = jnp.maximum(h2 + b2_ref[...], 0.0)               # (128, F)

    # Linear(128 -> 1); 1/temperature already folded into w3/b3.
    # (1,128) @ (128,F) lands the scores as a lane-dense (1, F) row.
    s = jnp.dot(w3_ref[...], h2, preferred_element_type=jnp.float32)
    s = s + b3_ref[...]                                   # (1, F)

    # Softmax over F (== nn.Softmax(dim=1) applied to the (B, F, 1) scores).
    s = s - jnp.max(s, axis=-1, keepdims=True)
    e = jnp.exp(s)
    p = e / jnp.sum(e, axis=-1, keepdims=True)            # (1, F)

    # mask.unsqueeze(-1) multiply (after the softmax, as in the spec).
    out_ref[0] = (p * mask_ref[0]).astype(out_ref.dtype)


def adapter_mlp(M, mask, params):
    """M: (B, 512, F) f32, mask: (B, F) f32 -> (B, F, 1) f32."""
    B, E, F = M.shape
    assert E == 512, "Adapter_MLP expects 512 input features"
    w1, b1, w2, b2, w3, b3, temp = params

    # Exact fold of the temperature: (w3 @ h + b3) / t == (w3/t) @ h + b3/t.
    w3f = (w3 / temp).reshape(1, 128).astype(jnp.float32)
    b3f = (b3 / temp).reshape(1, 1).astype(jnp.float32)
    b1c = b1.reshape(256, 1).astype(jnp.float32)
    b2c = b2.reshape(128, 1).astype(jnp.float32)
    mask3 = mask.reshape(B, 1, F).astype(jnp.float32)

    out = pl.pallas_call(
        _adapter_mlp_kernel,
        out_shape=jax.ShapeDtypeStruct((B, 1, F), jnp.float32),
        grid_spec=pltpu.PrefetchScalarGridSpec(
            num_scalar_prefetch=0,
            grid=(B,),
            in_specs=[
                pl.BlockSpec((1, E, F), lambda b: (b, 0, 0)),   # M[b] (512, F)
                pl.BlockSpec((256, 512), lambda b: (0, 0)),     # W1
                pl.BlockSpec((256, 1), lambda b: (0, 0)),       # b1
                pl.BlockSpec((128, 256), lambda b: (0, 0)),     # W2
                pl.BlockSpec((128, 1), lambda b: (0, 0)),       # b2
                pl.BlockSpec((1, 128), lambda b: (0, 0)),       # W3 / temp
                pl.BlockSpec((1, 1), lambda b: (0, 0)),         # b3 / temp
                pl.BlockSpec((1, 1, F), lambda b: (b, 0, 0)),   # mask row
            ],
            out_specs=pl.BlockSpec((1, 1, F), lambda b: (b, 0, 0)),
        ),
        compiler_params=pltpu.CompilerParams(
            dimension_semantics=("parallel",)),
    )(M, w1, b1c, w2, b2c, w3f, b3f, mask3)

    return out.reshape(B, F, 1)


def init_params(key, initial_temperature=1.0):
    """Deterministic synthetic parameters in PyTorch nn.Linear layout."""
    k1, k2, k3, k4, k5, k6 = jax.random.split(key, 6)
    w1 = jax.random.normal(k1, (256, 512), jnp.float32) * 0.02
    b1 = jax.random.normal(k2, (256,), jnp.float32) * 0.02
    w2 = jax.random.normal(k3, (128, 256), jnp.float32) * 0.02
    b2 = jax.random.normal(k4, (128,), jnp.float32) * 0.02
    w3 = jax.random.normal(k5, (1, 128), jnp.float32) * 0.02
    b3 = jax.random.normal(k6, (1,), jnp.float32) * 0.02
    temp = jnp.asarray(initial_temperature, jnp.float32)
    return (w1, b1, w2, b2, w3, b3, temp)


def adapter_mlp_ref(M, mask, params):
    """Pure-JAX reference mirroring the PyTorch forward exactly."""
    w1, b1, w2, b2, w3, b3, temp = params
    B, E, F = M.shape
    x = jnp.transpose(M, (0, 2, 1)).reshape(B * F, E)
    h1 = jnp.maximum(x @ w1.T + b1, 0.0)
    h2 = jnp.maximum(h1 @ w2.T + b2, 0.0)
    s = (h2 @ w3.T + b3).reshape(B, F, 1) / temp
    p = jax.nn.softmax(s, axis=1)                # nn.Softmax(dim=1)
    return p * mask[..., None]


if __name__ == "__main__":
    key = jax.random.PRNGKey(0)
    k_params, k_m, k_mask = jax.random.split(key, 3)

    B, E, F = 2, 512, 16                         # E fixed by the module
    params = init_params(k_params, initial_temperature=1.0)

    M = jax.random.normal(k_m, (B, E, F), jnp.float32)
    mask = (jax.random.uniform(k_mask, (B, F)) > 0.25).astype(jnp.float32)

    out = adapter_mlp(M, mask, params)
    out = jax.block_until_ready(out)

    ref = adapter_mlp_ref(M, mask, params)
    assert out.shape == (B, F, 1)
    assert jnp.allclose(out, ref, atol=1e-5, rtol=1e-5), (
        f"max abs err {float(jnp.max(jnp.abs(out - ref)))}")

    print("KERNEL_OK")
</pallas_src>

<mosaic_0001>
module attributes {stable_mosaic.version = 11 : i64} {
  func.func @_adapter_mlp_kernel(%arg0: i32, %arg1: memref<1x512x16xf32, #tpu.memory_space<vmem>>, %arg2: memref<256x512xf32, #tpu.memory_space<vmem>>, %arg3: memref<256x1xf32, #tpu.memory_space<vmem>>, %arg4: memref<128x256xf32, #tpu.memory_space<vmem>>, %arg5: memref<128x1xf32, #tpu.memory_space<vmem>>, %arg6: memref<1x128xf32, #tpu.memory_space<vmem>>, %arg7: memref<1x1xf32, #tpu.memory_space<vmem>>, %arg8: memref<1x1x16xf32, #tpu.memory_space<vmem>>, %arg9: memref<1x1x16xf32, #tpu.memory_space<vmem>>) attributes {dimension_semantics = [#tpu.dimension_semantics<parallel>], iteration_bounds = array<i64: 2>, scalar_prefetch = 0 : i64, scratch_operands = 0 : i64, tpu.core_type = #tpu.core_type<tc>, window_params = [{transform_indices = @transform_0, window_bounds = array<i64: 1, 512, 16>}, {pipeline_mode = #tpu.pipeline_mode<synchronous>, transform_indices = @transform_1, window_bounds = array<i64: 256, 512>}, {pipeline_mode = #tpu.pipeline_mode<synchronous>, transform_indices = @transform_2, window_bounds = array<i64: 256, 1>}, {pipeline_mode = #tpu.pipeline_mode<synchronous>, transform_indices = @transform_3, window_bounds = array<i64: 128, 256>}, {pipeline_mode = #tpu.pipeline_mode<synchronous>, transform_indices = @transform_4, window_bounds = array<i64: 128, 1>}, {pipeline_mode = #tpu.pipeline_mode<synchronous>, transform_indices = @transform_5, window_bounds = array<i64: 1, 128>}, {pipeline_mode = #tpu.pipeline_mode<synchronous>, transform_indices = @transform_6, window_bounds = array<i64: 1, 1>}, {transform_indices = @transform_7, window_bounds = array<i64: 1, 1, 16>}, {transform_indices = @transform_8, window_bounds = array<i64: 1, 1, 16>}]} {
    %c0 = arith.constant 0 : index
    %c0_0 = arith.constant 0 : index
    %c0_1 = arith.constant 0 : index
    %0 = vector.load %arg1[%c0, %c0_0, %c0_1] : memref<1x512x16xf32, #tpu.memory_space<vmem>>, vector<1x512x16xf32>
    %1 = vector.shape_cast %0 : vector<1x512x16xf32> to vector<512x16xf32>
    %c0_2 = arith.constant 0 : index
    %c0_3 = arith.constant 0 : index
    %2 = vector.load %arg2[%c0_2, %c0_3] : memref<256x512xf32, #tpu.memory_space<vmem>>, vector<256x512xf32>
    %cst = arith.constant dense<0.000000e+00> : vector<256x16xf32>
    %3 = tpu.matmul %2, %1, %cst {dimension_numbers = #tpu.dot_dimension_numbers<[1], [0], [0], [1], [0, 0, 1, 1], [], []>} : vector<256x512xf32>, vector<512x16xf32>, vector<256x16xf32> -> vector<256x16xf32>
    %c0_4 = arith.constant 0 : index
    %c0_5 = arith.constant 0 : index
    %4 = vector.load %arg3[%c0_4, %c0_5] : memref<256x1xf32, #tpu.memory_space<vmem>>, vector<256x1xf32>
    %5 = vector.broadcast %4 : vector<256x1xf32> to vector<256x16xf32>
    %6 = arith.addf %3, %5 : vector<256x16xf32>
    %cst_6 = arith.constant 0.000000e+00 : f32
    %7 = vector.broadcast %cst_6 : f32 to vector<256x16xf32>
    %8 = arith.maximumf %6, %7 : vector<256x16xf32>
    %c0_7 = arith.constant 0 : index
    %c0_8 = arith.constant 0 : index
    %9 = vector.load %arg4[%c0_7, %c0_8] : memref<128x256xf32, #tpu.memory_space<vmem>>, vector<128x256xf32>
    %cst_9 = arith.constant dense<0.000000e+00> : vector<128x16xf32>
    %10 = tpu.matmul %9, %8, %cst_9 {dimension_numbers = #tpu.dot_dimension_numbers<[1], [0], [0], [1], [0, 0, 1, 1], [], []>} : vector<128x256xf32>, vector<256x16xf32>, vector<128x16xf32> -> vector<128x16xf32>
    %c0_10 = arith.constant 0 : index
    %c0_11 = arith.constant 0 : index
    %11 = vector.load %arg5[%c0_10, %c0_11] : memref<128x1xf32, #tpu.memory_space<vmem>>, vector<128x1xf32>
    %12 = vector.broadcast %11 : vector<128x1xf32> to vector<128x16xf32>
    %13 = arith.addf %10, %12 : vector<128x16xf32>
    %cst_12 = arith.constant 0.000000e+00 : f32
    %14 = vector.broadcast %cst_12 : f32 to vector<128x16xf32>
    %15 = arith.maximumf %13, %14 : vector<128x16xf32>
    %c0_13 = arith.constant 0 : index
    %c0_14 = arith.constant 0 : index
    %16 = vector.load %arg6[%c0_13, %c0_14] : memref<1x128xf32, #tpu.memory_space<vmem>>, vector<1x128xf32>
    %cst_15 = arith.constant dense<0.000000e+00> : vector<1x16xf32>
    %17 = tpu.matmul %16, %15, %cst_15 {dimension_numbers = #tpu.dot_dimension_numbers<[1], [0], [0], [1], [0, 0, 1, 1], [], []>} : vector<1x128xf32>, vector<128x16xf32>, vector<1x16xf32> -> vector<1x16xf32>
    %c0_16 = arith.constant 0 : index
    %c0_17 = arith.constant 0 : index
    %18 = vector.load %arg7[%c0_16, %c0_17] : memref<1x1xf32, #tpu.memory_space<vmem>>, vector<1x1xf32>
    %19 = vector.broadcast %18 : vector<1x1xf32> to vector<1x16xf32>
    %20 = arith.addf %17, %19 : vector<1x16xf32>
    %cst_18 = arith.constant dense<0xFF800000> : vector<1xf32>
    %21 = vector.multi_reduction <maximumf>, %20, %cst_18 [1] : vector<1x16xf32> to vector<1xf32>
    %22 = vector.shape_cast %21 : vector<1xf32> to vector<1x1xf32>
    %23 = vector.broadcast %22 : vector<1x1xf32> to vector<1x16xf32>
    %24 = arith.subf %20, %23 : vector<1x16xf32>
    %25 = math.exp %24 : vector<1x16xf32>
    %cst_19 = arith.constant dense<0.000000e+00> : vector<1xf32>
    %26 = vector.multi_reduction <add>, %25, %cst_19 [1] : vector<1x16xf32> to vector<1xf32>
    %27 = vector.shape_cast %26 : vector<1xf32> to vector<1x1xf32>
    %28 = vector.broadcast %27 : vector<1x1xf32> to vector<1x16xf32>
    %29 = arith.divf %25, %28 : vector<1x16xf32>
    %c0_20 = arith.constant 0 : index
    %c0_21 = arith.constant 0 : index
    %c0_22 = arith.constant 0 : index
    %30 = vector.load %arg8[%c0_20, %c0_21, %c0_22] : memref<1x1x16xf32, #tpu.memory_space<vmem>>, vector<1x1x16xf32>
    %31 = vector.shape_cast %30 : vector<1x1x16xf32> to vector<1x16xf32>
    %32 = arith.mulf %29, %31 : vector<1x16xf32>
    %c0_23 = arith.constant 0 : index
    %c0_24 = arith.constant 0 : index
    %c0_25 = arith.constant 0 : index
    %33 = vector.load %arg9[%c0_23, %c0_24, %c0_25] : memref<1x1x16xf32, #tpu.memory_space<vmem>>, vector<1x1x16xf32>
    %34 = vector.shape_cast %33 : vector<1x1x16xf32> to vector<1x16xf32>
    %35 = vector.shape_cast %32 : vector<1x16xf32> to vector<1x1x16xf32>
    tpu.vector_store %arg9[%c0_23, %c0_24, %c0_25], %35 {strides = array<i32>} : memref<1x1x16xf32, #tpu.memory_space<vmem>>, vector<1x1x16xf32>,
    return
  }
  func.func @transform_0(%arg0: i32) -> (i32, i32, i32) {
    %c0_i32 = arith.constant 0 : i32
    %c0_i32_0 = arith.constant 0 : i32
    %c0_i32_1 = arith.constant 0 : i32
    return %arg0, %c0_i32, %c0_i32_0 : i32, i32, i32
  }
  func.func @transform_1(%arg0: i32) -> (i32, i32) {
    %c0_i32 = arith.constant 0 : i32
    %c0_i32_0 = arith.constant 0 : i32
    %c0_i32_1 = arith.constant 0 : i32
    return %c0_i32, %c0_i32_0 : i32, i32
  }
  func.func @transform_2(%arg0: i32) -> (i32, i32) {
    %c0_i32 = arith.constant 0 : i32
    %c0_i32_0 = arith.constant 0 : i32
    %c0_i32_1 = arith.constant 0 : i32
    return %c0_i32, %c0_i32_0 : i32, i32
  }
  func.func @transform_3(%arg0: i32) -> (i32, i32) {
    %c0_i32 = arith.constant 0 : i32
    %c0_i32_0 = arith.constant 0 : i32
    %c0_i32_1 = arith.constant 0 : i32
    return %c0_i32, %c0_i32_0 : i32, i32
  }
  func.func @transform_4(%arg0: i32) -> (i32, i32) {
    %c0_i32 = arith.constant 0 : i32
    %c0_i32_0 = arith.constant 0 : i32
    %c0_i32_1 = arith.constant 0 : i32
    return %c0_i32, %c0_i32_0 : i32, i32
  }
  func.func @transform_5(%arg0: i32) -> (i32, i32) {
    %c0_i32 = arith.constant 0 : i32
    %c0_i32_0 = arith.constant 0 : i32
    %c0_i32_1 = arith.constant 0 : i32
    return %c0_i32, %c0_i32_0 : i32, i32
  }
  func.func @transform_6(%arg0: i32) -> (i32, i32) {
    %c0_i32 = arith.constant 0 : i32
    %c0_i32_0 = arith.constant 0 : i32
    %c0_i32_1 = arith.constant 0 : i32
    return %c0_i32, %c0_i32_0 : i32, i32
  }
  func.func @transform_7(%arg0: i32) -> (i32, i32, i32) {
    %c0_i32 = arith.constant 0 : i32
    %c0_i32_0 = arith.constant 0 : i32
    %c0_i32_1 = arith.constant 0 : i32
    return %arg0, %c0_i32, %c0_i32_0 : i32, i32, i32
  }
  func.func @transform_8(%arg0: i32) -> (i32, i32, i32) {
    %c0_i32 = arith.constant 0 : i32
    %c0_i32_0 = arith.constant 0 : i32
    %c0_i32_1 = arith.constant 0 : i32
    return %arg0, %c0_i32, %c0_i32_0 : i32, i32, i32
  }
}

</mosaic_0001>

<llo_original>
// kernel: tpu_custom_call.1
$region0: #{tpu_custom_call.1}
  #allocation0 [shape = 'u32[]', space=smem, size = 0x4, offset = 0x4, fixed_abs, tag = 'smem constant byte address 0x4 - core index']
  #allocation1 [shape = 'u32[144,128]{1,0:T(1,128)}', space=vmem, size = 0x12000, scoped, tag = 'internal scratch']
  #allocation2 [shape = 'f32[1,1]{1,0:T(1,128)S(1)}', space=vmem, size = 0x200, scoped, tag = 'scoped memory for tpu_custom_call.1']
  %s0 = inlined_call_operand.vmem [shape: f32[2,512,16], index: 0, kind: input, shape index: {}]
  %s1 = inlined_call_operand.vmem [shape: f32[256,512], index: 1, kind: input, shape index: {}]
  %s2 = inlined_call_operand.vmem [shape: f32[256,1], index: 2, kind: input, shape index: {}]
  %s3 = inlined_call_operand.vmem [shape: f32[128,256], index: 3, kind: input, shape index: {}]
  %s4 = inlined_call_operand.vmem [shape: f32[128,1], index: 4, kind: input, shape index: {}]
  %s5 = inlined_call_operand.vmem [shape: f32[1,128], index: 5, kind: input, shape index: {}]
  %s6 = inlined_call_operand.<no memory space> [shape: f32[1,1], index: 6, kind: input, shape index: {}]
  %s7 = inlined_call_operand.vmem [shape: f32[2,1,16], index: 7, kind: input, shape index: {}]
  %s8 = inlined_call_operand.hbm [shape: f32[2,1,16], index: 8, kind: output, shape index: {}]
  %s9 = sld [smem:[#allocation0]]
  $region65: #{tpu_custom_call.1} parent=0
    _
  %s11 = ssub.s32 1, %s9
  %s12 = scalar_select 0, %s11, %s9
  %v13 = vstv %s6
  %14 = vst [vmem:[#allocation2] sm:$0x1] %v13
  $region1: #{tpu_custom_call.1} parent=0
    #allocation3 [shape = 'u8[1024]{0}', space=vmem, size = 0x400, scoped, tag = 'output window, operand 0']
    #allocation4 [shape = 's32[2]{0}', space=sflag, size = 0x8, scoped, tag = 'scoped memory for tpu_custom_call.1']
    %15 = vsyncpa [#allocation4], 0
    %s16 = scalar_lea.sflag [#allocation4], 1
    %17 = vsyncpa %s16, 0
    loop: start=0, step=1, limit=4
    $region2: #{tpu_custom_call.1} parent=1 // loop_pre_header
      _
    $region3: #{tpu_custom_call.1} parent=1 // loop_header
      %s19 = sphi 0, %s23
      %p20 = scmp.ge.s32.totalorder %s19, 4
      %s29 = sphi 0, %s31
      %s32 = sphi 0, %s29
      %s33 = sphi 0, %s32
      %s49 = sphi 0, %s33
      %s53 = sphi 0, %s53
      %s55 = sphi 0, %s53
      %s56 = sphi 0, %s55
      %s70 = sphi 0, %s56
      %s74 = sphi 0, %s74
      %s76 = sphi 0, %s74
      %s77 = sphi 0, %s76
      %s91 = sphi 0, %s77
      %s95 = sphi 0, %s95
      %s97 = sphi 0, %s95
      %s98 = sphi 0, %s97
      %s112 = sphi 0, %s98
      %s116 = sphi 0, %s116
      %s118 = sphi 0, %s116
      %s119 = sphi 0, %s118
      %s133 = sphi 0, %s119
      %s137 = sphi 0, %s137
      %s139 = sphi 0, %s137
      %s140 = sphi 0, %s139
      %s154 = sphi 0, %s140
      %s158 = sphi 0, %s158
      %s160 = sphi 0, %s158
      %s161 = sphi 0, %s160
      %s175 = sphi 0, %s161
      %s181 = sphi 0, %s183
      %s184 = sphi 0, %s181
      %s185 = sphi 0, %s184
      %s201 = sphi 0, %s185
      %s207 = sphi 0, %s209
      %s210 = sphi 0, %s207
      %s211 = sphi 0, %s210
      %s227 = sphi 0, %s211
    $region4: #{tpu_custom_call.1} parent=1 // loop_header_branch
      %22 = sbr.rel (%p20) target = $region8
    $region5: #{tpu_custom_call.1} parent=1 // loop_body
      %s24 = ssub.s32 %s19, 1
      %s25 = ssub.s32 %s19, 2
      %s26 = sadd.s32 %s19, 1
      %s27 = ssub.s32 %s19, %s26
      %p28 = scmp.eq.s32.totalorder %s27, 0
      %s30 = sadd.s32 %s29, 1
      %s31 = scalar_select %p28, %s29, %s30
      %p34 = pneg %p28
      %p35 = scmp.eq.s32.totalorder %s19, 1
      %p36 = por %p34, %p35
      %p37 = scmp.ne.s32.totalorder %s29, %s32
      %p38 = scmp.eq.s32.totalorder %s19, 0
      %p39 = por %p37, %p38
      %p40 = scmp.ne.s32.totalorder %s29, %s32
      %p41 = scmp.eq.s32.totalorder %s24, 1
      %p42 = por %p40, %p41
      %p43 = scmp.ne.s32.totalorder %s32, %s33
      %p44 = scmp.eq.s32.totalorder %s24, 0
      %p45 = por %p43, %p44
      %p46 = scmp.ne.s32.totalorder %s32, %s33
      %p47 = scmp.eq.s32.totalorder %s25, 1
      %p48 = por %p46, %p47
      %p50 = scmp.ne.s32.totalorder %s33, %s49
      %p51 = scmp.eq.s32.totalorder %s25, 0
      %p52 = por %p50, %p51
      %s54 = sadd.s32 %s53, 1
      %p57 = scmp.eq.s32.totalorder %s19, 1
      %p58 = scmp.ne.s32.totalorder %s53, %s55
      %p59 = scmp.eq.s32.totalorder %s19, 0
      %p60 = por %p58, %p59
      %p61 = scmp.ne.s32.totalorder %s53, %s55
      %p62 = scmp.eq.s32.totalorder %s24, 1
      %p63 = por %p61, %p62
      %p64 = scmp.ne.s32.totalorder %s55, %s56
      %p65 = scmp.eq.s32.totalorder %s24, 0
      %p66 = por %p64, %p65
      %p67 = scmp.ne.s32.totalorder %s55, %s56
      %p68 = scmp.eq.s32.totalorder %s25, 1
      %p69 = por %p67, %p68
      %p71 = scmp.ne.s32.totalorder %s56, %s70
      %p72 = scmp.eq.s32.totalorder %s25, 0
      %p73 = por %p71, %p72
      %s75 = sadd.s32 %s74, 1
      %p78 = scmp.eq.s32.totalorder %s19, 1
      %p79 = scmp.ne.s32.totalorder %s74, %s76
      %p80 = scmp.eq.s32.totalorder %s19, 0
      %p81 = por %p79, %p80
      %p82 = scmp.ne.s32.totalorder %s74, %s76
      %p83 = scmp.eq.s32.totalorder %s24, 1
      %p84 = por %p82, %p83
      %p85 = scmp.ne.s32.totalorder %s76, %s77
      %p86 = scmp.eq.s32.totalorder %s24, 0
      %p87 = por %p85, %p86
      %p88 = scmp.ne.s32.totalorder %s76, %s77
      %p89 = scmp.eq.s32.totalorder %s25, 1
      %p90 = por %p88, %p89
      %p92 = scmp.ne.s32.totalorder %s77, %s91
      %p93 = scmp.eq.s32.totalorder %s25, 0
      %p94 = por %p92, %p93
      %s96 = sadd.s32 %s95, 1
      %p99 = scmp.eq.s32.totalorder %s19, 1
      %p100 = scmp.ne.s32.totalorder %s95, %s97
      %p101 = scmp.eq.s32.totalorder %s19, 0
      %p102 = por %p100, %p101
      %p103 = scmp.ne.s32.totalorder %s95, %s97
      %p104 = scmp.eq.s32.totalorder %s24, 1
      %p105 = por %p103, %p104
      %p106 = scmp.ne.s32.totalorder %s97, %s98
      %p107 = scmp.eq.s32.totalorder %s24, 0
      %p108 = por %p106, %p107
      %p109 = scmp.ne.s32.totalorder %s97, %s98
      %p110 = scmp.eq.s32.totalorder %s25, 1
      %p111 = por %p109, %p110
      %p113 = scmp.ne.s32.totalorder %s98, %s112
      %p114 = scmp.eq.s32.totalorder %s25, 0
      %p115 = por %p113, %p114
      %s117 = sadd.s32 %s116, 1
      %p120 = scmp.eq.s32.totalorder %s19, 1
      %p121 = scmp.ne.s32.totalorder %s116, %s118
      %p122 = scmp.eq.s32.totalorder %s19, 0
      %p123 = por %p121, %p122
      %p124 = scmp.ne.s32.totalorder %s116, %s118
      %p125 = scmp.eq.s32.totalorder %s24, 1
      %p126 = por %p124, %p125
      %p127 = scmp.ne.s32.totalorder %s118, %s119
      %p128 = scmp.eq.s32.totalorder %s24, 0
      %p129 = por %p127, %p128
      %p130 = scmp.ne.s32.totalorder %s118, %s119
      %p131 = scmp.eq.s32.totalorder %s25, 1
      %p132 = por %p130, %p131
      %p134 = scmp.ne.s32.totalorder %s119, %s133
      %p135 = scmp.eq.s32.totalorder %s25, 0
      %p136 = por %p134, %p135
      %s138 = sadd.s32 %s137, 1
      %p141 = scmp.eq.s32.totalorder %s19, 1
      %p142 = scmp.ne.s32.totalorder %s137, %s139
      %p143 = scmp.eq.s32.totalorder %s19, 0
      %p144 = por %p142, %p143
      %p145 = scmp.ne.s32.totalorder %s137, %s139
      %p146 = scmp.eq.s32.totalorder %s24, 1
      %p147 = por %p145, %p146
      %p148 = scmp.ne.s32.totalorder %s139, %s140
      %p149 = scmp.eq.s32.totalorder %s24, 0
      %p150 = por %p148, %p149
      %p151 = scmp.ne.s32.totalorder %s139, %s140
      %p152 = scmp.eq.s32.totalorder %s25, 1
      %p153 = por %p151, %p152
      %p155 = scmp.ne.s32.totalorder %s140, %s154
      %p156 = scmp.eq.s32.totalorder %s25, 0
      %p157 = por %p155, %p156
      %s159 = sadd.s32 %s158, 1
      %p162 = scmp.eq.s32.totalorder %s19, 1
      %p163 = scmp.ne.s32.totalorder %s158, %s160
      %p164 = scmp.eq.s32.totalorder %s19, 0
      %p165 = por %p163, %p164
      %p166 = scmp.ne.s32.totalorder %s158, %s160
      %p167 = scmp.eq.s32.totalorder %s24, 1
      %p168 = por %p166, %p167
      %p169 = scmp.ne.s32.totalorder %s160, %s161
      %p170 = scmp.eq.s32.totalorder %s24, 0
      %p171 = por %p169, %p170
      %p172 = scmp.ne.s32.totalorder %s160, %s161
      %p173 = scmp.eq.s32.totalorder %s25, 1
      %p174 = por %p172, %p173
      %p176 = scmp.ne.s32.totalorder %s161, %s175
      %p177 = scmp.eq.s32.totalorder %s25, 0
      %p178 = por %p176, %p177
      %s179 = ssub.s32 %s19, %s26
      %p180 = scmp.eq.s32.totalorder %s179, 0
      %s182 = sadd.s32 %s181, 1
      %s183 = scalar_select %p180, %s181, %s182
      %p186 = pneg %p180
      %p187 = scmp.eq.s32.totalorder %s19, 1
      %p188 = por %p186, %p187
      %p189 = scmp.ne.s32.totalorder %s181, %s184
      %p190 = scmp.eq.s32.totalorder %s19, 0
      %p191 = por %p189, %p190
      %p192 = scmp.ne.s32.totalorder %s181, %s184
      %p193 = scmp.eq.s32.totalorder %s24, 1
      %p194 = por %p192, %p193
      %p195 = scmp.ne.s32.totalorder %s184, %s185
      %p196 = scmp.eq.s32.totalorder %s24, 0
      %p197 = por %p195, %p196
      %p198 = scmp.ne.s32.totalorder %s184, %s185
      %p199 = scmp.eq.s32.totalorder %s25, 1
      %p200 = por %p198, %p199
      %p202 = scmp.ne.s32.totalorder %s185, %s201
      %p203 = scmp.eq.s32.totalorder %s25, 0
      %p204 = por %p202, %p203
      %s205 = ssub.s32 %s19, %s26
      %p206 = scmp.eq.s32.totalorder %s205, 0
      %s208 = sadd.s32 %s207, 1
      %s209 = scalar_select %p206, %s207, %s208
      %p212 = pneg %p206
      %p213 = scmp.eq.s32.totalorder %s19, 1
      %p214 = por %p212, %p213
      %p215 = scmp.ne.s32.totalorder %s207, %s210
      %p216 = scmp.eq.s32.totalorder %s19, 0
      %p217 = por %p215, %p216
      %p218 = scmp.ne.s32.totalorder %s207, %s210
      %p219 = scmp.eq.s32.totalorder %s24, 1
      %p220 = por %p218, %p219
      %p221 = scmp.ne.s32.totalorder %s210, %s211
      %p222 = scmp.eq.s32.totalorder %s24, 0
      %p223 = por %p221, %p222
      %p224 = scmp.ne.s32.totalorder %s210, %s211
      %p225 = scmp.eq.s32.totalorder %s25, 1
      %p226 = por %p224, %p225
      %p228 = scmp.ne.s32.totalorder %s211, %s227
      %p229 = scmp.eq.s32.totalorder %s25, 0
      %p230 = por %p228, %p229
      %p231 = scmp.le.s32.totalorder 1, %s19
      %p232 = scmp.lt.s32.totalorder %s19, 3
      %p233 = pnand %p231, %p232
      %p234 = pneg %p233
      // Predicated region
      $region9: #{tpu_custom_call.1} parent=5 // pred_check
        _
      $region10: #{tpu_custom_call.1} parent=5 // pred_check_branch
        %236 = sbr.rel (%p233) target = $region12
      $region11: #{tpu_custom_call.1} parent=5 // pred_region
        %s237 = ssub.s32 %s19, 1
        // Predicated region
        $region13: #{tpu_custom_call.1} parent=11 // pred_check
          %p238 = pneg %p66
        $region14: #{tpu_custom_call.1} parent=11 // pred_check_branch
          %240 = sbr.rel (%p238) target = $region16
        $region15: #{tpu_custom_call.1} parent=11 // pred_region
          _
        $region16: #{tpu_custom_call.1} parent=11 // pred_fallthru
          _
        // Predicated region
        $region17: #{tpu_custom_call.1} parent=11 // pred_check
          %p241 = pneg %p87
        $region18: #{tpu_custom_call.1} parent=11 // pred_check_branch
          %243 = sbr.rel (%p241) target = $region20
        $region19: #{tpu_custom_call.1} parent=11 // pred_region
          _
        $region20: #{tpu_custom_call.1} parent=11 // pred_fallthru
          _
        // Predicated region
        $region21: #{tpu_custom_call.1} parent=11 // pred_check
          %p244 = pneg %p108
        $region22: #{tpu_custom_call.1} parent=11 // pred_check_branch
          %246 = sbr.rel (%p244) target = $region24
        $region23: #{tpu_custom_call.1} parent=11 // pred_region
          _
        $region24: #{tpu_custom_call.1} parent=11 // pred_fallthru
          _
        // Predicated region
        $region25: #{tpu_custom_call.1} parent=11 // pred_check
          %p247 = pneg %p129
        $region26: #{tpu_custom_call.1} parent=11 // pred_check_branch
          %249 = sbr.rel (%p247) target = $region28
        $region27: #{tpu_custom_call.1} parent=11 // pred_region
          _
        $region28: #{tpu_custom_call.1} parent=11 // pred_fallthru
          _
        // Predicated region
        $region29: #{tpu_custom_call.1} parent=11 // pred_check
          %p250 = pneg %p150
        $region30: #{tpu_custom_call.1} parent=11 // pred_check_branch
          %252 = sbr.rel (%p250) target = $region32
        $region31: #{tpu_custom_call.1} parent=11 // pred_region
          _
        $region32: #{tpu_custom_call.1} parent=11 // pred_fallthru
          _
        // Predicated region
        $region33: #{tpu_custom_call.1} parent=11 // pred_check
          %p253 = pneg %p171
        $region34: #{tpu_custom_call.1} parent=11 // pred_check_branch
          %255 = sbr.rel (%p253) target = $region36
        $region35: #{tpu_custom_call.1} parent=11 // pred_region
          _
        $region36: #{tpu_custom_call.1} parent=11 // pred_fallthru
          _
      $region12: #{tpu_custom_call.1} parent=5 // pred_fallthru
        _
      %p256 = scmp.lt.s32.totalorder %s19, 2
      // Predicated region
      $region37: #{tpu_custom_call.1} parent=5 // pred_check
        %p257 = pneg %p256
      $region38: #{tpu_custom_call.1} parent=5 // pred_check_branch
        %259 = sbr.rel (%p257) target = $region40
      $region39: #{tpu_custom_call.1} parent=5 // pred_region
        // Predicated region
        $region41: #{tpu_custom_call.1} parent=39 // pred_check
          %p260 = pneg %p39
        $region42: #{tpu_custom_call.1} parent=39 // pred_check_branch
          %262 = sbr.rel (%p260) target = $region44
        $region43: #{tpu_custom_call.1} parent=39 // pred_region
          %p263 = scmp.lt.s32.totalorder %s19, 1
          %s264 = scalar_select %p263, %s19, 1
          %s265 = smul.addr %s264, 64
          %s266 = smul.addr %s265, 8
          %s267 = scalar_lea.vmem %s0, %s266
        $region44: #{tpu_custom_call.1} parent=39 // pred_fallthru
          _
        // Predicated region
        $region45: #{tpu_custom_call.1} parent=39 // pred_check
          %p268 = pneg %p191
        $region46: #{tpu_custom_call.1} parent=39 // pred_check_branch
          %270 = sbr.rel (%p268) target = $region48
        $region47: #{tpu_custom_call.1} parent=39 // pred_region
          %p271 = scmp.lt.s32.totalorder %s19, 1
          %s272 = scalar_select %p271, %s19, 1
          %s273 = scalar_lea.vmem %s7, %s272
        $region48: #{tpu_custom_call.1} parent=39 // pred_fallthru
          _
      $region40: #{tpu_custom_call.1} parent=5 // pred_fallthru
        _
      %p274 = scmp.le.s32.totalorder 1, %s19
      %p275 = scmp.lt.s32.totalorder %s19, 3
      %p276 = pnand %p274, %p275
      %p277 = pneg %p276
      // Predicated region
      $region49: #{tpu_custom_call.1} parent=5 // pred_check
        _
      $region50: #{tpu_custom_call.1} parent=5 // pred_check_branch
        %279 = sbr.rel (%p276) target = $region52
      $region51: #{tpu_custom_call.1} parent=5 // pred_region
        %s280 = ssub.s32 %s19, 1
        %p281 = scmp.lt.s32.totalorder %s24, 1
        %s282 = scalar_select %p281, %s24, 1
        %s283 = smul.addr %s282, 64
        %s284 = smul.addr %s283, 8
        %s285 = scalar_lea.vmem %s0, %s284
        %p286 = pneg %p45
        %p287 = pneg %p42
        %p288 = pneg %p66
        %p289 = pneg %p63
        %p290 = pneg %p87
        %p291 = pneg %p84
        %p292 = pneg %p108
        %p293 = pneg %p105
        %p294 = pneg %p129
        %p295 = pneg %p126
        %p296 = pneg %p150
        %p297 = pneg %p147
        %p298 = pneg %p171
        %p299 = pneg %p168
        %p300 = scmp.lt.s32.totalorder %s24, 1
        %s301 = scalar_select %p300, %s24, 1
        %s302 = scalar_lea.vmem %s7, %s301
        %p303 = pneg %p197
        %p304 = pneg %p194
        %p305 = pneg %p223
        %p306 = pneg %p220
        %s307 = sand.u32 %s210, 1
        %s308 = scalar_lea.sflag [#allocation4], %s307
        %s309 = sand.u32 %s210, 1
        %s310 = scalar_lea.vmem [#allocation3], %s309
        %p311 = scmp.lt.s32.totalorder %s24, 1
        %s312 = scalar_select %p311, %s24, 1
        %s313 = smul.addr %s312, 64
        %s314 = smul.addr %s313, 8
        %s315 = scalar_lea.vmem %s0, %s314
        %p316 = scmp.lt.s32.totalorder %s24, 1
        %s317 = scalar_select %p316, %s24, 1
        %s318 = scalar_lea.vmem %s7, %s317
        %v319 = vld [vmem:[%s315] sm:$0xff]
        %v320 = vld [vmem:[%s315 + $0x8] sm:$0xff]
        %v321 = vld [vmem:[%s315 + $0x10] sm:$0xff]
        %v322 = vld [vmem:[%s315 + $0x18] sm:$0xff]
        %v323 = vld [vmem:[%s315 + $0x20] sm:$0xff]
        %v324 = vld [vmem:[%s315 + $0x28] sm:$0xff]
        %v325 = vld [vmem:[%s315 + $0x30] sm:$0xff]
        %v326 = vld [vmem:[%s315 + $0x38] sm:$0xff]
        %v327 = vld [vmem:[%s315 + $0x40] sm:$0xff]
        %v328 = vld [vmem:[%s315 + $0x48] sm:$0xff]
        %v329 = vld [vmem:[%s315 + $0x50] sm:$0xff]
        %v330 = vld [vmem:[%s315 + $0x58] sm:$0xff]
        %v331 = vld [vmem:[%s315 + $0x60] sm:$0xff]
        %v332 = vld [vmem:[%s315 + $0x68] sm:$0xff]
        %v333 = vld [vmem:[%s315 + $0x70] sm:$0xff]
        %v334 = vld [vmem:[%s315 + $0x78] sm:$0xff]
        %v335 = vld [vmem:[%s315 + $0x80] sm:$0xff]
        %v336 = vld [vmem:[%s315 + $0x88] sm:$0xff]
        %v337 = vld [vmem:[%s315 + $0x90] sm:$0xff]
        %v338 = vld [vmem:[%s315 + $0x98] sm:$0xff]
        %v339 = vld [vmem:[%s315 + $0xa0] sm:$0xff]
        %v340 = vld [vmem:[%s315 + $0xa8] sm:$0xff]
        %v341 = vld [vmem:[%s315 + $0xb0] sm:$0xff]
        %v342 = vld [vmem:[%s315 + $0xb8] sm:$0xff]
        %v343 = vld [vmem:[%s315 + $0xc0] sm:$0xff]
        %v344 = vld [vmem:[%s315 + $0xc8] sm:$0xff]
        %v345 = vld [vmem:[%s315 + $0xd0] sm:$0xff]
        %v346 = vld [vmem:[%s315 + $0xd8] sm:$0xff]
        %v347 = vld [vmem:[%s315 + $0xe0] sm:$0xff]
        %v348 = vld [vmem:[%s315 + $0xe8] sm:$0xff]
        %v349 = vld [vmem:[%s315 + $0xf0] sm:$0xff]
        %v350 = vld [vmem:[%s315 + $0xf8] sm:$0xff]
        %v351 = vld [vmem:[%s315 + $0x100] sm:$0xff]
        %v352 = vld [vmem:[%s315 + $0x108] sm:$0xff]
        %v353 = vld [vmem:[%s315 + $0x110] sm:$0xff]
        %v354 = vld [vmem:[%s315 + $0x118] sm:$0xff]
        %v355 = vld [vmem:[%s315 + $0x120] sm:$0xff]
        %v356 = vld [vmem:[%s315 + $0x128] sm:$0xff]
        %v357 = vld [vmem:[%s315 + $0x130] sm:$0xff]
        %v358 = vld [vmem:[%s315 + $0x138] sm:$0xff]
        %v359 = vld [vmem:[%s315 + $0x140] sm:$0xff]
        %v360 = vld [vmem:[%s315 + $0x148] sm:$0xff]
        %v361 = vld [vmem:[%s315 + $0x150] sm:$0xff]
        %v362 = vld [vmem:[%s315 + $0x158] sm:$0xff]
        %v363 = vld [vmem:[%s315 + $0x160] sm:$0xff]
        %v364 = vld [vmem:[%s315 + $0x168] sm:$0xff]
        %v365 = vld [vmem:[%s315 + $0x170] sm:$0xff]
        %v366 = vld [vmem:[%s315 + $0x178] sm:$0xff]
        %v367 = vld [vmem:[%s315 + $0x180] sm:$0xff]
        %v368 = vld [vmem:[%s315 + $0x188] sm:$0xff]
        %v369 = vld [vmem:[%s315 + $0x190] sm:$0xff]
        %v370 = vld [vmem:[%s315 + $0x198] sm:$0xff]
        %v371 = vld [vmem:[%s315 + $0x1a0] sm:$0xff]
        %v372 = vld [vmem:[%s315 + $0x1a8] sm:$0xff]
        %v373 = vld [vmem:[%s315 + $0x1b0] sm:$0xff]
        %v374 = vld [vmem:[%s315 + $0x1b8] sm:$0xff]
        %v375 = vld [vmem:[%s315 + $0x1c0] sm:$0xff]
        %v376 = vld [vmem:[%s315 + $0x1c8] sm:$0xff]
        %v377 = vld [vmem:[%s315 + $0x1d0] sm:$0xff]
        %v378 = vld [vmem:[%s315 + $0x1d8] sm:$0xff]
        %v379 = vld [vmem:[%s315 + $0x1e0] sm:$0xff]
        %v380 = vld [vmem:[%s315 + $0x1e8] sm:$0xff]
        %v381 = vld [vmem:[%s315 + $0x1f0] sm:$0xff]
        %v382 = vld [vmem:[%s315 + $0x1f8] sm:$0xff]
        %v383 = vld [vmem:[%s1] sm:$0xff]
        %v384 = vld [vmem:[%s1 + $0x8] sm:$0xff]
        %v385 = vld [vmem:[%s1 + $0x10] sm:$0xff]
        %v386 = vld [vmem:[%s1 + $0x18] sm:$0xff]
        %v387 = vld [vmem:[%s1 + $0x20] sm:$0xff]
        %v388 = vld [vmem:[%s1 + $0x28] sm:$0xff]
        %v389 = vld [vmem:[%s1 + $0x30] sm:$0xff]
        %v390 = vld [vmem:[%s1 + $0x38] sm:$0xff]
        %v391 = vld [vmem:[%s1 + $0x40] sm:$0xff]
        %v392 = vld [vmem:[%s1 + $0x48] sm:$0xff]
        %v393 = vld [vmem:[%s1 + $0x50] sm:$0xff]
        %v394 = vld [vmem:[%s1 + $0x58] sm:$0xff]
        %v395 = vld [vmem:[%s1 + $0x60] sm:$0xff]
        %v396 = vld [vmem:[%s1 + $0x68] sm:$0xff]
        %v397 = vld [vmem:[%s1 + $0x70] sm:$0xff]
        %v398 = vld [vmem:[%s1 + $0x78] sm:$0xff]
        %v399 = vld [vmem:[%s1 + $0x80] sm:$0xff]
        %v400 = vld [vmem:[%s1 + $0x88] sm:$0xff]
        %v401 = vld [vmem:[%s1 + $0x90] sm:$0xff]
        %v402 = vld [vmem:[%s1 + $0x98] sm:$0xff]
        %v403 = vld [vmem:[%s1 + $0xa0] sm:$0xff]
        %v404 = vld [vmem:[%s1 + $0xa8] sm:$0xff]
        %v405 = vld [vmem:[%s1 + $0xb0] sm:$0xff]
        %v406 = vld [vmem:[%s1 + $0xb8] sm:$0xff]
        %v407 = vld [vmem:[%s1 + $0xc0] sm:$0xff]
        %v408 = vld [vmem:[%s1 + $0xc8] sm:$0xff]
        %v409 = vld [vmem:[%s1 + $0xd0] sm:$0xff]
        %v410 = vld [vmem:[%s1 + $0xd8] sm:$0xff]
        %v411 = vld [vmem:[%s1 + $0xe0] sm:$0xff]
        %v412 = vld [vmem:[%s1 + $0xe8] sm:$0xff]
        %v413 = vld [vmem:[%s1 + $0xf0] sm:$0xff]
        %v414 = vld [vmem:[%s1 + $0xf8] sm:$0xff]
        %v415 = vld [vmem:[%s1 + $0x100] sm:$0xff]
        %v416 = vld [vmem:[%s1 + $0x108] sm:$0xff]
        %v417 = vld [vmem:[%s1 + $0x110] sm:$0xff]
        %v418 = vld [vmem:[%s1 + $0x118] sm:$0xff]
        %v419 = vld [vmem:[%s1 + $0x120] sm:$0xff]
        %v420 = vld [vmem:[%s1 + $0x128] sm:$0xff]
        %v421 = vld [vmem:[%s1 + $0x130] sm:$0xff]
        %v422 = vld [vmem:[%s1 + $0x138] sm:$0xff]
        %v423 = vld [vmem:[%s1 + $0x140] sm:$0xff]
        %v424 = vld [vmem:[%s1 + $0x148] sm:$0xff]
        %v425 = vld [vmem:[%s1 + $0x150] sm:$0xff]
        %v426 = vld [vmem:[%s1 + $0x158] sm:$0xff]
        %v427 = vld [vmem:[%s1 + $0x160] sm:$0xff]
        %v428 = vld [vmem:[%s1 + $0x168] sm:$0xff]
        %v429 = vld [vmem:[%s1 + $0x170] sm:$0xff]
        %v430 = vld [vmem:[%s1 + $0x178] sm:$0xff]
        %v431 = vld [vmem:[%s1 + $0x180] sm:$0xff]
        %v432 = vld [vmem:[%s1 + $0x188] sm:$0xff]
        %v433 = vld [vmem:[%s1 + $0x190] sm:$0xff]
        %v434 = vld [vmem:[%s1 + $0x198] sm:$0xff]
        %v435 = vld [vmem:[%s1 + $0x1a0] sm:$0xff]
        %v436 = vld [vmem:[%s1 + $0x1a8] sm:$0xff]
        %v437 = vld [vmem:[%s1 + $0x1b0] sm:$0xff]
        %v438 = vld [vmem:[%s1 + $0x1b8] sm:$0xff]
        %v439 = vld [vmem:[%s1 + $0x1c0] sm:$0xff]
        %v440 = vld [vmem:[%s1 + $0x1c8] sm:$0xff]
        %v441 = vld [vmem:[%s1 + $0x1d0] sm:$0xff]
        %v442 = vld [vmem:[%s1 + $0x1d8] sm:$0xff]
        %v443 = vld [vmem:[%s1 + $0x1e0] sm:$0xff]
        %v444 = vld [vmem:[%s1 + $0x1e8] sm:$0xff]
        %v445 = vld [vmem:[%s1 + $0x1f0] sm:$0xff]
        %v446 = vld [vmem:[%s1 + $0x1f8] sm:$0xff]
        %v447 = vld [vmem:[%s1 + $0x200] sm:$0xff]
        %v448 = vld [vmem:[%s1 + $0x208] sm:$0xff]
        %v449 = vld [vmem:[%s1 + $0x210] sm:$0xff]
        %v450 = vld [vmem:[%s1 + $0x218] sm:$0xff]
        %v451 = vld [vmem:[%s1 + $0x220] sm:$0xff]
        %v452 = vld [vmem:[%s1 + $0x228] sm:$0xff]
        %v453 = vld [vmem:[%s1 + $0x230] sm:$0xff]
        %v454 = vld [vmem:[%s1 + $0x238] sm:$0xff]
        %v455 = vld [vmem:[%s1 + $0x240] sm:$0xff]
        %v456 = vld [vmem:[%s1 + $0x248] sm:$0xff]
        %v457 = vld [vmem:[%s1 + $0x250] sm:$0xff]
        %v458 = vld [vmem:[%s1 + $0x258] sm:$0xff]
        %v459 = vld [vmem:[%s1 + $0x260] sm:$0xff]
        %v460 = vld [vmem:[%s1 + $0x268] sm:$0xff]
        %v461 = vld [vmem:[%s1 + $0x270] sm:$0xff]
        %v462 = vld [vmem:[%s1 + $0x278] sm:$0xff]
        %v463 = vld [vmem:[%s1 + $0x280] sm:$0xff]
        %v464 = vld [vmem:[%s1 + $0x288] sm:$0xff]
        %v465 = vld [vmem:[%s1 + $0x290] sm:$0xff]
        %v466 = vld [vmem:[%s1 + $0x298] sm:$0xff]
        %v467 = vld [vmem:[%s1 + $0x2a0] sm:$0xff]
        %v468 = vld [vmem:[%s1 + $0x2a8] sm:$0xff]
        %v469 = vld [vmem:[%s1 + $0x2b0] sm:$0xff]
        %v470 = vld [vmem:[%s1 + $0x2b8] sm:$0xff]
        %v471 = vld [vmem:[%s1 + $0x2c0] sm:$0xff]
        %v472 = vld [vmem:[%s1 + $0x2c8] sm:$0xff]
        %v473 = vld [vmem:[%s1 + $0x2d0] sm:$0xff]
        %v474 = vld [vmem:[%s1 + $0x2d8] sm:$0xff]
        %v475 = vld [vmem:[%s1 + $0x2e0] sm:$0xff]
        %v476 = vld [vmem:[%s1 + $0x2e8] sm:$0xff]
        %v477 = vld [vmem:[%s1 + $0x2f0] sm:$0xff]
        %v478 = vld [vmem:[%s1 + $0x2f8] sm:$0xff]
        %v479 = vld [vmem:[%s1 + $0x300] sm:$0xff]
        %v480 = vld [vmem:[%s1 + $0x308] sm:$0xff]
        %v481 = vld [vmem:[%s1 + $0x310] sm:$0xff]
        %v482 = vld [vmem:[%s1 + $0x318] sm:$0xff]
        %v483 = vld [vmem:[%s1 + $0x320] sm:$0xff]
        %v484 = vld [vmem:[%s1 + $0x328] sm:$0xff]
        %v485 = vld [vmem:[%s1 + $0x330] sm:$0xff]
        %v486 = vld [vmem:[%s1 + $0x338] sm:$0xff]
        %v487 = vld [vmem:[%s1 + $0x340] sm:$0xff]
        %v488 = vld [vmem:[%s1 + $0x348] sm:$0xff]
        %v489 = vld [vmem:[%s1 + $0x350] sm:$0xff]
        %v490 = vld [vmem:[%s1 + $0x358] sm:$0xff]
        %v491 = vld [vmem:[%s1 + $0x360] sm:$0xff]
        %v492 = vld [vmem:[%s1 + $0x368] sm:$0xff]
        %v493 = vld [vmem:[%s1 + $0x370] sm:$0xff]
        %v494 = vld [vmem:[%s1 + $0x378] sm:$0xff]
        %v495 = vld [vmem:[%s1 + $0x380] sm:$0xff]
        %v496 = vld [vmem:[%s1 + $0x388] sm:$0xff]
        %v497 = vld [vmem:[%s1 + $0x390] sm:$0xff]
        %v498 = vld [vmem:[%s1 + $0x398] sm:$0xff]
        %v499 = vld [vmem:[%s1 + $0x3a0] sm:$0xff]
        %v500 = vld [vmem:[%s1 + $0x3a8] sm:$0xff]
        %v501 = vld [vmem:[%s1 + $0x3b0] sm:$0xff]
        %v502 = vld [vmem:[%s1 + $0x3b8] sm:$0xff]
        %v503 = vld [vmem:[%s1 + $0x3c0] sm:$0xff]
        %v504 = vld [vmem:[%s1 + $0x3c8] sm:$0xff]
        %v505 = vld [vmem:[%s1 + $0x3d0] sm:$0xff]
        %v506 = vld [vmem:[%s1 + $0x3d8] sm:$0xff]
        %v507 = vld [vmem:[%s1 + $0x3e0] sm:$0xff]
        %v508 = vld [vmem:[%s1 + $0x3e8] sm:$0xff]
        %v509 = vld [vmem:[%s1 + $0x3f0] sm:$0xff]
        %v510 = vld [vmem:[%s1 + $0x3f8] sm:$0xff]
        %v511 = vld [vmem:[%s2] sm:$0xff]
        %v512 = vld [vmem:[%s2 + $0x8] sm:$0xff]
        %v513 = vld [vmem:[%s2 + $0x10] sm:$0xff]
        %v514 = vld [vmem:[%s2 + $0x18] sm:$0xff]
        %v515 = vld [vmem:[%s2 + $0x20] sm:$0xff]
        %v516 = vld [vmem:[%s2 + $0x28] sm:$0xff]
        %v517 = vld [vmem:[%s2 + $0x30] sm:$0xff]
        %v518 = vld [vmem:[%s2 + $0x38] sm:$0xff]
        %v519 = vld [vmem:[%s2 + $0x40] sm:$0xff]
        %v520 = vld [vmem:[%s2 + $0x48] sm:$0xff]
        %v521 = vld [vmem:[%s2 + $0x50] sm:$0xff]
        %v522 = vld [vmem:[%s2 + $0x58] sm:$0xff]
        %v523 = vld [vmem:[%s2 + $0x60] sm:$0xff]
        %v524 = vld [vmem:[%s2 + $0x68] sm:$0xff]
        %v525 = vld [vmem:[%s2 + $0x70] sm:$0xff]
        %v526 = vld [vmem:[%s2 + $0x78] sm:$0xff]
        %v527 = vld [vmem:[%s2 + $0x80] sm:$0xff]
        %v528 = vld [vmem:[%s2 + $0x88] sm:$0xff]
        %v529 = vld [vmem:[%s2 + $0x90] sm:$0xff]
        %v530 = vld [vmem:[%s2 + $0x98] sm:$0xff]
        %v531 = vld [vmem:[%s2 + $0xa0] sm:$0xff]
        %v532 = vld [vmem:[%s2 + $0xa8] sm:$0xff]
        %v533 = vld [vmem:[%s2 + $0xb0] sm:$0xff]
        %v534 = vld [vmem:[%s2 + $0xb8] sm:$0xff]
        %v535 = vld [vmem:[%s2 + $0xc0] sm:$0xff]
        %v536 = vld [vmem:[%s2 + $0xc8] sm:$0xff]
        %v537 = vld [vmem:[%s2 + $0xd0] sm:$0xff]
        %v538 = vld [vmem:[%s2 + $0xd8] sm:$0xff]
        %v539 = vld [vmem:[%s2 + $0xe0] sm:$0xff]
        %v540 = vld [vmem:[%s2 + $0xe8] sm:$0xff]
        %v541 = vld [vmem:[%s2 + $0xf0] sm:$0xff]
        %v542 = vld [vmem:[%s2 + $0xf8] sm:$0xff]
        %544 = vset.pattern.permute.xlu0 0
        %545 = vperm.xlu0 %544, %v511
        %v546 = vpop.permute.xlu0 %545
        %549 = vset.pattern.permute.xlu0 0
        %550 = vperm.xlu0 %549, %v512
        %v551 = vpop.permute.xlu0 %550
        %554 = vset.pattern.permute.xlu0 0
        %555 = vperm.xlu0 %554, %v513
        %v556 = vpop.permute.xlu0 %555
        %559 = vset.pattern.permute.xlu0 0
        %560 = vperm.xlu0 %559, %v514
        %v561 = vpop.permute.xlu0 %560
        %564 = vset.pattern.permute.xlu0 0
        %565 = vperm.xlu0 %564, %v515
        %v566 = vpop.permute.xlu0 %565
        %569 = vset.pattern.permute.xlu0 0
        %570 = vperm.xlu0 %569, %v516
        %v571 = vpop.permute.xlu0 %570
        %574 = vset.pattern.permute.xlu0 0
        %575 = vperm.xlu0 %574, %v517
        %v576 = vpop.permute.xlu0 %575
        %579 = vset.pattern.permute.xlu0 0
        %580 = vperm.xlu0 %579, %v518
        %v581 = vpop.permute.xlu0 %580
        %584 = vset.pattern.permute.xlu0 0
        %585 = vperm.xlu0 %584, %v519
        %v586 = vpop.permute.xlu0 %585
        %589 = vset.pattern.permute.xlu0 0
        %590 = vperm.xlu0 %589, %v520
        %v591 = vpop.permute.xlu0 %590
        %594 = vset.pattern.permute.xlu0 0
        %595 = vperm.xlu0 %594, %v521
        %v596 = vpop.permute.xlu0 %595
        %599 = vset.pattern.permute.xlu0 0
        %600 = vperm.xlu0 %599, %v522
        %v601 = vpop.permute.xlu0 %600
        %604 = vset.pattern.permute.xlu0 0
        %605 = vperm.xlu0 %604, %v523
        %v606 = vpop.permute.xlu0 %605
        %609 = vset.pattern.permute.xlu0 0
        %610 = vperm.xlu0 %609, %v524
        %v611 = vpop.permute.xlu0 %610
        %614 = vset.pattern.permute.xlu0 0
        %615 = vperm.xlu0 %614, %v525
        %v616 = vpop.permute.xlu0 %615
        %619 = vset.pattern.permute.xlu0 0
        %620 = vperm.xlu0 %619, %v526
        %v621 = vpop.permute.xlu0 %620
        %624 = vset.pattern.permute.xlu0 0
        %625 = vperm.xlu0 %624, %v527
        %v626 = vpop.permute.xlu0 %625
        %629 = vset.pattern.permute.xlu0 0
        %630 = vperm.xlu0 %629, %v528
        %v631 = vpop.permute.xlu0 %630
        %634 = vset.pattern.permute.xlu0 0
        %635 = vperm.xlu0 %634, %v529
        %v636 = vpop.permute.xlu0 %635
        %639 = vset.pattern.permute.xlu0 0
        %640 = vperm.xlu0 %639, %v530
        %v641 = vpop.permute.xlu0 %640
        %644 = vset.pattern.permute.xlu0 0
        %645 = vperm.xlu0 %644, %v531
        %v646 = vpop.permute.xlu0 %645
        %649 = vset.pattern.permute.xlu0 0
        %650 = vperm.xlu0 %649, %v532
        %v651 = vpop.permute.xlu0 %650
        %654 = vset.pattern.permute.xlu0 0
        %655 = vperm.xlu0 %654, %v533
        %v656 = vpop.permute.xlu0 %655
        %659 = vset.pattern.permute.xlu0 0
        %660 = vperm.xlu0 %659, %v534
        %v661 = vpop.permute.xlu0 %660
        %664 = vset.pattern.permute.xlu0 0
        %665 = vperm.xlu0 %664, %v535
        %v666 = vpop.permute.xlu0 %665
        %669 = vset.pattern.permute.xlu0 0
        %670 = vperm.xlu0 %669, %v536
        %v671 = vpop.permute.xlu0 %670
        %674 = vset.pattern.permute.xlu0 0
        %675 = vperm.xlu0 %674, %v537
        %v676 = vpop.permute.xlu0 %675
        %679 = vset.pattern.permute.xlu0 0
        %680 = vperm.xlu0 %679, %v538
        %v681 = vpop.permute.xlu0 %680
        %684 = vset.pattern.permute.xlu0 0
        %685 = vperm.xlu0 %684, %v539
        %v686 = vpop.permute.xlu0 %685
        %689 = vset.pattern.permute.xlu0 0
        %690 = vperm.xlu0 %689, %v540
        %v691 = vpop.permute.xlu0 %690
        %694 = vset.pattern.permute.xlu0 0
        %695 = vperm.xlu0 %694, %v541
        %v696 = vpop.permute.xlu0 %695
        %699 = vset.pattern.permute.xlu0 0
        %700 = vperm.xlu0 %699, %v542
        %v701 = vpop.permute.xlu0 %700
        %703 = vmatprep.subr.mxu0 0.0
        %704 = vmatpush1.msra.mxu0 %v319
        %705 = vmatprep.subr.mxu0 0.0
        %706 = vmatpush1.msra.mxu0 %v320
        %707 = vmatprep.subr.mxu0 0.0
        %708 = vmatpush1.msra.mxu0 %v321
        %709 = vmatprep.subr.mxu0 0.0
        %710 = vmatpush1.msra.mxu0 %v322
        %711 = vmatprep.subr.mxu0 0.0
        %712 = vmatpush1.msra.mxu0 %v323
        %713 = vmatprep.subr.mxu0 0.0
        %714 = vmatpush1.msra.mxu0 %v324
        %715 = vmatprep.subr.mxu0 0.0
        %716 = vmatpush1.msra.mxu0 %v325
        %717 = vmatprep.subr.mxu0 0.0
        %718 = vmatpush1.msra.mxu0 %v326
        %719 = vmatprep.subr.mxu0 0.0
        %720 = vmatpush1.msra.mxu0 %v327
        %721 = vmatprep.subr.mxu0 0.0
        %722 = vmatpush1.msra.mxu0 %v328
        %723 = vmatprep.subr.mxu0 0.0
        %724 = vmatpush1.msra.mxu0 %v329
        %725 = vmatprep.subr.mxu0 0.0
        %726 = vmatpush1.msra.mxu0 %v330
        %727 = vmatprep.subr.mxu0 0.0
        %728 = vmatpush1.msra.mxu0 %v331
        %729 = vmatprep.subr.mxu0 0.0
        %730 = vmatpush1.msra.mxu0 %v332
        %731 = vmatprep.subr.mxu0 0.0
        %732 = vmatpush1.msra.mxu0 %v333
        %733 = vmatprep.subr.mxu0 0.0
        %734 = vmatpush1.msra.mxu0 %v334
        %735 = vmatprep.subr.mxu0 0.0
        %736 = vmatpush1.msra.mxu0 %v335
        %737 = vmatprep.subr.mxu0 0.0
        %738 = vmatpush1.msra.mxu0 %v336
        %739 = vmatprep.subr.mxu0 0.0
        %740 = vmatpush1.msra.mxu0 %v337
        %741 = vmatprep.subr.mxu0 0.0
        %742 = vmatpush1.msra.mxu0 %v338
        %743 = vmatprep.subr.mxu0 0.0
        %744 = vmatpush1.msra.mxu0 %v339
        %745 = vmatprep.subr.mxu0 0.0
        %746 = vmatpush1.msra.mxu0 %v340
        %747 = vmatprep.subr.mxu0 0.0
        %748 = vmatpush1.msra.mxu0 %v341
        %749 = vmatprep.subr.mxu0 0.0
        %750 = vmatpush1.msra.mxu0 %v342
        %751 = vmatprep.subr.mxu0 0.0
        %752 = vmatpush1.msra.mxu0 %v343
        %753 = vmatprep.subr.mxu0 0.0
        %754 = vmatpush1.msra.mxu0 %v344
        %755 = vmatprep.subr.mxu0 0.0
        %756 = vmatpush1.msra.mxu0 %v345
        %757 = vmatprep.subr.mxu0 0.0
        %758 = vmatpush1.msra.mxu0 %v346
        %759 = vmatprep.subr.mxu0 0.0
        %760 = vmatpush1.msra.mxu0 %v347
        %761 = vmatprep.subr.mxu0 0.0
        %762 = vmatpush1.msra.mxu0 %v348
        %763 = vmatprep.subr.mxu0 0.0
        %764 = vmatpush1.msra.mxu0 %v349
        %765 = vmatprep.subr.mxu0 0.0
        %766 = vmatpush1.msra.mxu0 %v350
        %767 = vmatprep.mubr.f32.mxu0 %v384
        %768 = vmatmul.mubr.f32.gmra.mrb[0].mxu0 %v383
        %v769 = vpop.f32.mrb[0].mxu0
        %v770 = vadd.f32 %v546, %v769
        %v771 = vpop.f32.mrb[0].mxu0
        %772 = vmatprep.mubr.f32.mxu0 %v388
        %773 = vmatmul.mubr.f32.gmra.mrb[0].mxu0 %v387
        %v774 = vpop.f32.mrb[0].mxu0
        %v775 = vadd.f32 %v551, %v774
        %v776 = vpop.f32.mrb[0].mxu0
        %777 = vmatprep.mubr.f32.mxu0 %v392
        %778 = vmatmul.mubr.f32.gmra.mrb[0].mxu0 %v391
        %v779 = vpop.f32.mrb[0].mxu0
        %v780 = vadd.f32 %v556, %v779
        %v781 = vpop.f32.mrb[0].mxu0
        %782 = vmatprep.mubr.f32.mxu0 %v396
        %783 = vmatmul.mubr.f32.gmra.mrb[0].mxu0 %v395
        %v784 = vpop.f32.mrb[0].mxu0
        %v785 = vadd.f32 %v561, %v784
        %v786 = vpop.f32.mrb[0].mxu0
        %787 = vmatprep.mubr.f32.mxu0 %v400
        %788 = vmatmul.mubr.f32.gmra.mrb[0].mxu0 %v399
        %v789 = vpop.f32.mrb[0].mxu0
        %v790 = vadd.f32 %v566, %v789
        %v791 = vpop.f32.mrb[0].mxu0
        %792 = vmatprep.mubr.f32.mxu0 %v404
        %793 = vmatmul.mubr.f32.gmra.mrb[0].mxu0 %v403
        %v794 = vpop.f32.mrb[0].mxu0
        %v795 = vadd.f32 %v571, %v794
        %v796 = vpop.f32.mrb[0].mxu0
        %797 = vmatprep.mubr.f32.mxu0 %v408
        %798 = vmatmul.mubr.f32.gmra.mrb[0].mxu0 %v407
        %v799 = vpop.f32.mrb[0].mxu0
        %v800 = vadd.f32 %v576, %v799
        %v801 = vpop.f32.mrb[0].mxu0
        %802 = vmatprep.mubr.f32.mxu0 %v412
        %803 = vmatmul.mubr.f32.gmra.mrb[0].mxu0 %v411
        %v804 = vpop.f32.mrb[0].mxu0
        %v805 = vadd.f32 %v581, %v804
        %v806 = vpop.f32.mrb[0].mxu0
        %807 = vmatprep.mubr.f32.mxu0 %v416
        %808 = vmatmul.mubr.f32.gmra.mrb[0].mxu0 %v415
        %v809 = vpop.f32.mrb[0].mxu0
        %v810 = vadd.f32 %v586, %v809
        %v811 = vpop.f32.mrb[0].mxu0
        %812 = vmatprep.mubr.f32.mxu0 %v420
        %813 = vmatmul.mubr.f32.gmra.mrb[0].mxu0 %v419
        %v814 = vpop.f32.mrb[0].mxu0
        %v815 = vadd.f32 %v591, %v814
        %v816 = vpop.f32.mrb[0].mxu0
        %817 = vmatprep.mubr.f32.mxu0 %v424
        %818 = vmatmul.mubr.f32.gmra.mrb[0].mxu0 %v423
        %v819 = vpop.f32.mrb[0].mxu0
        %v820 = vadd.f32 %v596, %v819
        %v821 = vpop.f32.mrb[0].mxu0
        %822 = vmatprep.mubr.f32.mxu0 %v428
        %823 = vmatmul.mubr.f32.gmra.mrb[0].mxu0 %v427
        %v824 = vpop.f32.mrb[0].mxu0
        %v825 = vadd.f32 %v601, %v824
        %v826 = vpop.f32.mrb[0].mxu0
        %827 = vmatprep.mubr.f32.mxu0 %v432
        %828 = vmatmul.mubr.f32.gmra.mrb[0].mxu0 %v431
        %v829 = vpop.f32.mrb[0].mxu0
        %v830 = vadd.f32 %v606, %v829
        %v831 = vpop.f32.mrb[0].mxu0
        %832 = vmatprep.mubr.f32.mxu0 %v436
        %833 = vmatmul.mubr.f32.gmra.mrb[0].mxu0 %v435
        %v834 = vpop.f32.mrb[0].mxu0
        %v835 = vadd.f32 %v611, %v834
        %v836 = vpop.f32.mrb[0].mxu0
        %837 = vmatprep.mubr.f32.mxu0 %v440
        %838 = vmatmul.mubr.f32.gmra.mrb[0].mxu0 %v439
        %v839 = vpop.f32.mrb[0].mxu0
        %v840 = vadd.f32 %v616, %v839
        %v841 = vpop.f32.mrb[0].mxu0
        %842 = vmatprep.mubr.f32.mxu0 %v444
        %843 = vmatmul.mubr.f32.gmra.mrb[0].mxu0 %v443
        %v844 = vpop.f32.mrb[0].mxu0
        %v845 = vadd.f32 %v621, %v844
        %v846 = vpop.f32.mrb[0].mxu0
        %847 = vmatprep.mubr.f32.mxu0 %v448
        %848 = vmatmul.mubr.f32.gmra.mrb[0].mxu0 %v447
        %v849 = vpop.f32.mrb[0].mxu0
        %v850 = vadd.f32 %v626, %v849
        %v851 = vpop.f32.mrb[0].mxu0
        %852 = vmatprep.mubr.f32.mxu0 %v452
        %853 = vmatmul.mubr.f32.gmra.mrb[0].mxu0 %v451
        %v854 = vpop.f32.mrb[0].mxu0
        %v855 = vadd.f32 %v631, %v854
        %v856 = vpop.f32.mrb[0].mxu0
        %857 = vmatprep.mubr.f32.mxu0 %v456
        %858 = vmatmul.mubr.f32.gmra.mrb[0].mxu0 %v455
        %v859 = vpop.f32.mrb[0].mxu0
        %v860 = vadd.f32 %v636, %v859
        %v861 = vpop.f32.mrb[0].mxu0
        %862 = vmatprep.mubr.f32.mxu0 %v460
        %863 = vmatmul.mubr.f32.gmra.mrb[0].mxu0 %v459
        %v864 = vpop.f32.mrb[0].mxu0
        %v865 = vadd.f32 %v641, %v864
        %v866 = vpop.f32.mrb[0].mxu0
        %867 = vmatprep.mubr.f32.mxu0 %v464
        %868 = vmatmul.mubr.f32.gmra.mrb[0].mxu0 %v463
        %v869 = vpop.f32.mrb[0].mxu0
        %v870 = vadd.f32 %v646, %v869
        %v871 = vpop.f32.mrb[0].mxu0
        %872 = vmatprep.mubr.f32.mxu0 %v468
        %873 = vmatmul.mubr.f32.gmra.mrb[0].mxu0 %v467
        %v874 = vpop.f32.mrb[0].mxu0
        %v875 = vadd.f32 %v651, %v874
        %v876 = vpop.f32.mrb[0].mxu0
        %877 = vmatprep.mubr.f32.mxu0 %v472
        %878 = vmatmul.mubr.f32.gmra.mrb[0].mxu0 %v471
        %v879 = vpop.f32.mrb[0].mxu0
        %v880 = vadd.f32 %v656, %v879
        %v881 = vpop.f32.mrb[0].mxu0
        %882 = vmatprep.mubr.f32.mxu0 %v476
        %883 = vmatmul.mubr.f32.gmra.mrb[0].mxu0 %v475
        %v884 = vpop.f32.mrb[0].mxu0
        %v885 = vadd.f32 %v661, %v884
        %v886 = vpop.f32.mrb[0].mxu0
        %887 = vmatprep.mubr.f32.mxu0 %v480
        %888 = vmatmul.mubr.f32.gmra.mrb[0].mxu0 %v479
        %v889 = vpop.f32.mrb[0].mxu0
        %v890 = vadd.f32 %v666, %v889
        %v891 = vpop.f32.mrb[0].mxu0
        %892 = vmatprep.mubr.f32.mxu0 %v484
        %893 = vmatmul.mubr.f32.gmra.mrb[0].mxu0 %v483
        %v894 = vpop.f32.mrb[0].mxu0
        %v895 = vadd.f32 %v671, %v894
        %v896 = vpop.f32.mrb[0].mxu0
        %897 = vmatprep.mubr.f32.mxu0 %v488
        %898 = vmatmul.mubr.f32.gmra.mrb[0].mxu0 %v487
        %v899 = vpop.f32.mrb[0].mxu0
        %v900 = vadd.f32 %v676, %v899
        %v901 = vpop.f32.mrb[0].mxu0
        %902 = vmatprep.mubr.f32.mxu0 %v492
        %903 = vmatmul.mubr.f32.gmra.mrb[0].mxu0 %v491
        %v904 = vpop.f32.mrb[0].mxu0
        %v905 = vadd.f32 %v681, %v904
        %v906 = vpop.f32.mrb[0].mxu0
        %907 = vmatprep.mubr.f32.mxu0 %v496
        %908 = vmatmul.mubr.f32.gmra.mrb[0].mxu0 %v495
        %v909 = vpop.f32.mrb[0].mxu0
        %v910 = vadd.f32 %v686, %v909
        %v911 = vpop.f32.mrb[0].mxu0
        %912 = vmatprep.mubr.f32.mxu0 %v500
        %913 = vmatmul.mubr.f32.gmra.mrb[0].mxu0 %v499
        %v914 = vpop.f32.mrb[0].mxu0
        %v915 = vadd.f32 %v691, %v914
        %v916 = vpop.f32.mrb[0].mxu0
        %917 = vmatprep.mubr.f32.mxu0 %v504
        %918 = vmatmul.mubr.f32.gmra.mrb[0].mxu0 %v503
        %v919 = vpop.f32.mrb[0].mxu0
        %v920 = vadd.f32 %v696, %v919
        %v921 = vpop.f32.mrb[0].mxu0
        %922 = vmatprep.mubr.f32.mxu0 %v508
        %923 = vmatmul.mubr.f32.gmra.mrb[0].mxu0 %v507
        %v924 = vpop.f32.mrb[0].mxu0
        %v925 = vadd.f32 %v701, %v924
        %v926 = vpop.f32.mrb[0].mxu0
        %927 = vdwg.mxu0
        %928 = vmatprep.subr.mxu0 0.0
        %929 = vmatpush1.msra.mxu0 %v351
        %930 = vmatprep.subr.mxu0 0.0
        %931 = vmatpush1.msra.mxu0 %v352
        %932 = vmatprep.subr.mxu0 0.0
        %933 = vmatpush1.msra.mxu0 %v353
        %934 = vmatprep.subr.mxu0 0.0
        %935 = vmatpush1.msra.mxu0 %v354
        %936 = vmatprep.subr.mxu0 0.0
        %937 = vmatpush1.msra.mxu0 %v355
        %938 = vmatprep.subr.mxu0 0.0
        %939 = vmatpush1.msra.mxu0 %v356
        %940 = vmatprep.subr.mxu0 0.0
        %941 = vmatpush1.msra.mxu0 %v357
        %942 = vmatprep.subr.mxu0 0.0
        %943 = vmatpush1.msra.mxu0 %v358
        %944 = vmatprep.subr.mxu0 0.0
        %945 = vmatpush1.msra.mxu0 %v359
        %946 = vmatprep.subr.mxu0 0.0
        %947 = vmatpush1.msra.mxu0 %v360
        %948 = vmatprep.subr.mxu0 0.0
        %949 = vmatpush1.msra.mxu0 %v361
        %950 = vmatprep.subr.mxu0 0.0
        %951 = vmatpush1.msra.mxu0 %v362
        %952 = vmatprep.subr.mxu0 0.0
        %953 = vmatpush1.msra.mxu0 %v363
        %954 = vmatprep.subr.mxu0 0.0
        %955 = vmatpush1.msra.mxu0 %v364
        %956 = vmatprep.subr.mxu0 0.0
        %957 = vmatpush1.msra.mxu0 %v365
        %958 = vmatprep.subr.mxu0 0.0
        %959 = vmatpush1.msra.mxu0 %v366
        %960 = vmatprep.subr.mxu0 0.0
        %961 = vmatpush1.msra.mxu0 %v367
        %962 = vmatprep.subr.mxu0 0.0
        %963 = vmatpush1.msra.mxu0 %v368
        %964 = vmatprep.subr.mxu0 0.0
        %965 = vmatpush1.msra.mxu0 %v369
        %966 = vmatprep.subr.mxu0 0.0
        %967 = vmatpush1.msra.mxu0 %v370
        %968 = vmatprep.subr.mxu0 0.0
        %969 = vmatpush1.msra.mxu0 %v371
        %970 = vmatprep.subr.mxu0 0.0
        %971 = vmatpush1.msra.mxu0 %v372
        %972 = vmatprep.subr.mxu0 0.0
        %973 = vmatpush1.msra.mxu0 %v373
        %974 = vmatprep.subr.mxu0 0.0
        %975 = vmatpush1.msra.mxu0 %v374
        %976 = vmatprep.subr.mxu0 0.0
        %977 = vmatpush1.msra.mxu0 %v375
        %978 = vmatprep.subr.mxu0 0.0
        %979 = vmatpush1.msra.mxu0 %v376
        %980 = vmatprep.subr.mxu0 0.0
        %981 = vmatpush1.msra.mxu0 %v377
        %982 = vmatprep.subr.mxu0 0.0
        %983 = vmatpush1.msra.mxu0 %v378
        %984 = vmatprep.subr.mxu0 0.0
        %985 = vmatpush1.msra.mxu0 %v379
        %986 = vmatprep.subr.mxu0 0.0
        %987 = vmatpush1.msra.mxu0 %v380
        %988 = vmatprep.subr.mxu0 0.0
        %989 = vmatpush1.msra.mxu0 %v381
        %990 = vmatprep.subr.mxu0 0.0
        %991 = vmatpush1.msra.mxu0 %v382
        %992 = vmatprep.mubr.f32.mxu0 %v386
        %993 = vmatmul.mubr.f32.gmra.mrb[0].mxu0 %v385
        %v994 = vpop.f32.mrb[0].mxu0
        %v995 = vadd.f32 %v770, %v994
        %v996 = vpop.f32.mrb[0].mxu0
        %997 = vmatprep.mubr.f32.mxu0 %v390
        %998 = vmatmul.mubr.f32.gmra.mrb[0].mxu0 %v389
        %v999 = vpop.f32.mrb[0].mxu0
        %v1000 = vadd.f32 %v775, %v999
        %v1001 = vpop.f32.mrb[0].mxu0
        %1002 = vmatprep.mubr.f32.mxu0 %v394
        %1003 = vmatmul.mubr.f32.gmra.mrb[0].mxu0 %v393
        %v1004 = vpop.f32.mrb[0].mxu0
        %v1005 = vadd.f32 %v780, %v1004
        %v1006 = vpop.f32.mrb[0].mxu0
        %1007 = vmatprep.mubr.f32.mxu0 %v398
        %1008 = vmatmul.mubr.f32.gmra.mrb[0].mxu0 %v397
        %v1009 = vpop.f32.mrb[0].mxu0
        %v1010 = vadd.f32 %v785, %v1009
        %v1011 = vpop.f32.mrb[0].mxu0
        %1012 = vmatprep.mubr.f32.mxu0 %v402
        %1013 = vmatmul.mubr.f32.gmra.mrb[0].mxu0 %v401
        %v1014 = vpop.f32.mrb[0].mxu0
        %v1015 = vadd.f32 %v790, %v1014
        %v1016 = vpop.f32.mrb[0].mxu0
        %1017 = vmatprep.mubr.f32.mxu0 %v406
        %1018 = vmatmul.mubr.f32.gmra.mrb[0].mxu0 %v405
        %v1019 = vpop.f32.mrb[0].mxu0
        %v1020 = vadd.f32 %v795, %v1019
        %v1021 = vpop.f32.mrb[0].mxu0
        %1022 = vmatprep.mubr.f32.mxu0 %v410
        %1023 = vmatmul.mubr.f32.gmra.mrb[0].mxu0 %v409
        %v1024 = vpop.f32.mrb[0].mxu0
        %v1025 = vadd.f32 %v800, %v1024
        %v1026 = vpop.f32.mrb[0].mxu0
        %1027 = vmatprep.mubr.f32.mxu0 %v414
        %1028 = vmatmul.mubr.f32.gmra.mrb[0].mxu0 %v413
        %v1029 = vpop.f32.mrb[0].mxu0
        %v1030 = vadd.f32 %v805, %v1029
        %v1031 = vpop.f32.mrb[0].mxu0
        %1032 = vmatprep.mubr.f32.mxu0 %v418
        %1033 = vmatmul.mubr.f32.gmra.mrb[0].mxu0 %v417
        %v1034 = vpop.f32.mrb[0].mxu0
        %v1035 = vadd.f32 %v810, %v1034
        %v1036 = vpop.f32.mrb[0].mxu0
        %1037 = vmatprep.mubr.f32.mxu0 %v422
        %1038 = vmatmul.mubr.f32.gmra.mrb[0].mxu0 %v421
        %v1039 = vpop.f32.mrb[0].mxu0
        %v1040 = vadd.f32 %v815, %v1039
        %v1041 = vpop.f32.mrb[0].mxu0
        %1042 = vmatprep.mubr.f32.mxu0 %v426
        %1043 = vmatmul.mubr.f32.gmra.mrb[0].mxu0 %v425
        %v1044 = vpop.f32.mrb[0].mxu0
        %v1045 = vadd.f32 %v820, %v1044
        %v1046 = vpop.f32.mrb[0].mxu0
        %1047 = vmatprep.mubr.f32.mxu0 %v430
        %1048 = vmatmul.mubr.f32.gmra.mrb[0].mxu0 %v429
        %v1049 = vpop.f32.mrb[0].mxu0
        %v1050 = vadd.f32 %v825, %v1049
        %v1051 = vpop.f32.mrb[0].mxu0
        %1052 = vmatprep.mubr.f32.mxu0 %v434
        %1053 = vmatmul.mubr.f32.gmra.mrb[0].mxu0 %v433
        %v1054 = vpop.f32.mrb[0].mxu0
        %v1055 = vadd.f32 %v830, %v1054
        %v1056 = vpop.f32.mrb[0].mxu0
        %1057 = vmatprep.mubr.f32.mxu0 %v438
        %1058 = vmatmul.mubr.f32.gmra.mrb[0].mxu0 %v437
        %v1059 = vpop.f32.mrb[0].mxu0
        %v1060 = vadd.f32 %v835, %v1059
        %v1061 = vpop.f32.mrb[0].mxu0
        %1062 = vmatprep.mubr.f32.mxu0 %v442
        %1063 = vmatmul.mubr.f32.gmra.mrb[0].mxu0 %v441
        %v1064 = vpop.f32.mrb[0].mxu0
        %v1065 = vadd.f32 %v840, %v1064
        %v1066 = vpop.f32.mrb[0].mxu0
        %1067 = vmatprep.mubr.f32.mxu0 %v446
        %1068 = vmatmul.mubr.f32.gmra.mrb[0].mxu0 %v445
        %v1069 = vpop.f32.mrb[0].mxu0
        %v1070 = vadd.f32 %v845, %v1069
        %v1071 = vpop.f32.mrb[0].mxu0
        %1072 = vmatprep.mubr.f32.mxu0 %v450
        %1073 = vmatmul.mubr.f32.gmra.mrb[0].mxu0 %v449
        %v1074 = vpop.f32.mrb[0].mxu0
        %v1075 = vadd.f32 %v850, %v1074
        %v1076 = vpop.f32.mrb[0].mxu0
        %1077 = vmatprep.mubr.f32.mxu0 %v454
        %1078 = vmatmul.mubr.f32.gmra.mrb[0].mxu0 %v453
        %v1079 = vpop.f32.mrb[0].mxu0
        %v1080 = vadd.f32 %v855, %v1079
        %v1081 = vpop.f32.mrb[0].mxu0
        %1082 = vmatprep.mubr.f32.mxu0 %v458
        %1083 = vmatmul.mubr.f32.gmra.mrb[0].mxu0 %v457
        %v1084 = vpop.f32.mrb[0].mxu0
        %v1085 = vadd.f32 %v860, %v1084
        %v1086 = vpop.f32.mrb[0].mxu0
        %1087 = vmatprep.mubr.f32.mxu0 %v462
        %1088 = vmatmul.mubr.f32.gmra.mrb[0].mxu0 %v461
        %v1089 = vpop.f32.mrb[0].mxu0
        %v1090 = vadd.f32 %v865, %v1089
        %v1091 = vpop.f32.mrb[0].mxu0
        %1092 = vmatprep.mubr.f32.mxu0 %v466
        %1093 = vmatmul.mubr.f32.gmra.mrb[0].mxu0 %v465
        %v1094 = vpop.f32.mrb[0].mxu0
        %v1095 = vadd.f32 %v870, %v1094
        %v1096 = vpop.f32.mrb[0].mxu0
        %1097 = vmatprep.mubr.f32.mxu0 %v470
        %1098 = vmatmul.mubr.f32.gmra.mrb[0].mxu0 %v469
        %v1099 = vpop.f32.mrb[0].mxu0
        %v1100 = vadd.f32 %v875, %v1099
        %v1101 = vpop.f32.mrb[0].mxu0
        %1102 = vmatprep.mubr.f32.mxu0 %v474
        %1103 = vmatmul.mubr.f32.gmra.mrb[0].mxu0 %v473
        %v1104 = vpop.f32.mrb[0].mxu0
        %v1105 = vadd.f32 %v880, %v1104
        %v1106 = vpop.f32.mrb[0].mxu0
        %1107 = vmatprep.mubr.f32.mxu0 %v478
        %1108 = vmatmul.mubr.f32.gmra.mrb[0].mxu0 %v477
        %v1109 = vpop.f32.mrb[0].mxu0
        %v1110 = vadd.f32 %v885, %v1109
        %v1111 = vpop.f32.mrb[0].mxu0
        %1112 = vmatprep.mubr.f32.mxu0 %v482
        %1113 = vmatmul.mubr.f32.gmra.mrb[0].mxu0 %v481
        %v1114 = vpop.f32.mrb[0].mxu0
        %v1115 = vadd.f32 %v890, %v1114
        %v1116 = vpop.f32.mrb[0].mxu0
        %1117 = vmatprep.mubr.f32.mxu0 %v486
        %1118 = vmatmul.mubr.f32.gmra.mrb[0].mxu0 %v485
        %v1119 = vpop.f32.mrb[0].mxu0
        %v1120 = vadd.f32 %v895, %v1119
        %v1121 = vpop.f32.mrb[0].mxu0
        %1122 = vmatprep.mubr.f32.mxu0 %v490
        %1123 = vmatmul.mubr.f32.gmra.mrb[0].mxu0 %v489
        %v1124 = vpop.f32.mrb[0].mxu0
        %v1125 = vadd.f32 %v900, %v1124
        %v1126 = vpop.f32.mrb[0].mxu0
        %1127 = vmatprep.mubr.f32.mxu0 %v494
        %1128 = vmatmul.mubr.f32.gmra.mrb[0].mxu0 %v493
        %v1129 = vpop.f32.mrb[0].mxu0
        %v1130 = vadd.f32 %v905, %v1129
        %v1131 = vpop.f32.mrb[0].mxu0
        %1132 = vmatprep.mubr.f32.mxu0 %v498
        %1133 = vmatmul.mubr.f32.gmra.mrb[0].mxu0 %v497
        %v1134 = vpop.f32.mrb[0].mxu0
        %v1135 = vadd.f32 %v910, %v1134
        %v1136 = vpop.f32.mrb[0].mxu0
        %1137 = vmatprep.mubr.f32.mxu0 %v502
        %1138 = vmatmul.mubr.f32.gmra.mrb[0].mxu0 %v501
        %v1139 = vpop.f32.mrb[0].mxu0
        %v1140 = vadd.f32 %v915, %v1139
        %v1141 = vpop.f32.mrb[0].mxu0
        %1142 = vmatprep.mubr.f32.mxu0 %v506
        %1143 = vmatmul.mubr.f32.gmra.mrb[0].mxu0 %v505
        %v1144 = vpop.f32.mrb[0].mxu0
        %v1145 = vadd.f32 %v920, %v1144
        %v1146 = vpop.f32.mrb[0].mxu0
        %1147 = vmatprep.mubr.f32.mxu0 %v510
        %1148 = vmatmul.mubr.f32.gmra.mrb[0].mxu0 %v509
        %v1149 = vpop.f32.mrb[0].mxu0
        %v1150 = vadd.f32 %v925, %v1149
        %v1151 = vpop.f32.mrb[0].mxu0
        %1152 = vdwg.mxu0
        %v1153 = vmax.f32 %v995, 0.0
        %v1154 = vmax.f32 %v1000, 0.0
        %v1155 = vmax.f32 %v1005, 0.0
        %v1156 = vmax.f32 %v1010, 0.0
        %v1157 = vmax.f32 %v1015, 0.0
        %v1158 = vmax.f32 %v1020, 0.0
        %v1159 = vmax.f32 %v1025, 0.0
        %v1160 = vmax.f32 %v1030, 0.0
        %v1161 = vmax.f32 %v1035, 0.0
        %v1162 = vmax.f32 %v1040, 0.0
        %v1163 = vmax.f32 %v1045, 0.0
        %v1164 = vmax.f32 %v1050, 0.0
        %v1165 = vmax.f32 %v1055, 0.0
        %v1166 = vmax.f32 %v1060, 0.0
        %v1167 = vmax.f32 %v1065, 0.0
        %v1168 = vmax.f32 %v1070, 0.0
        %v1169 = vmax.f32 %v1075, 0.0
        %v1170 = vmax.f32 %v1080, 0.0
        %v1171 = vmax.f32 %v1085, 0.0
        %v1172 = vmax.f32 %v1090, 0.0
        %v1173 = vmax.f32 %v1095, 0.0
        %v1174 = vmax.f32 %v1100, 0.0
        %v1175 = vmax.f32 %v1105, 0.0
        %v1176 = vmax.f32 %v1110, 0.0
        %v1177 = vmax.f32 %v1115, 0.0
        %v1178 = vmax.f32 %v1120, 0.0
        %v1179 = vmax.f32 %v1125, 0.0
        %v1180 = vmax.f32 %v1130, 0.0
        %v1181 = vmax.f32 %v1135, 0.0
        %v1182 = vmax.f32 %v1140, 0.0
        %v1183 = vmax.f32 %v1145, 0.0
        %v1184 = vmax.f32 %v1150, 0.0
        %v1185 = vld [vmem:[%s3] sm:$0xff]
        %v1186 = vld [vmem:[%s3 + $0x8] sm:$0xff]
        %v1187 = vld [vmem:[%s3 + $0x10] sm:$0xff]
        %v1188 = vld [vmem:[%s3 + $0x18] sm:$0xff]
        %v1189 = vld [vmem:[%s3 + $0x20] sm:$0xff]
        %v1190 = vld [vmem:[%s3 + $0x28] sm:$0xff]
        %v1191 = vld [vmem:[%s3 + $0x30] sm:$0xff]
        %v1192 = vld [vmem:[%s3 + $0x38] sm:$0xff]
        %v1193 = vld [vmem:[%s3 + $0x40] sm:$0xff]
        %v1194 = vld [vmem:[%s3 + $0x48] sm:$0xff]
        %v1195 = vld [vmem:[%s3 + $0x50] sm:$0xff]
        %v1196 = vld [vmem:[%s3 + $0x58] sm:$0xff]
        %v1197 = vld [vmem:[%s3 + $0x60] sm:$0xff]
        %v1198 = vld [vmem:[%s3 + $0x68] sm:$0xff]
        %v1199 = vld [vmem:[%s3 + $0x70] sm:$0xff]
        %v1200 = vld [vmem:[%s3 + $0x78] sm:$0xff]
        %v1201 = vld [vmem:[%s3 + $0x80] sm:$0xff]
        %v1202 = vld [vmem:[%s3 + $0x88] sm:$0xff]
        %v1203 = vld [vmem:[%s3 + $0x90] sm:$0xff]
        %v1204 = vld [vmem:[%s3 + $0x98] sm:$0xff]
        %v1205 = vld [vmem:[%s3 + $0xa0] sm:$0xff]
        %v1206 = vld [vmem:[%s3 + $0xa8] sm:$0xff]
        %v1207 = vld [vmem:[%s3 + $0xb0] sm:$0xff]
        %v1208 = vld [vmem:[%s3 + $0xb8] sm:$0xff]
        %v1209 = vld [vmem:[%s3 + $0xc0] sm:$0xff]
        %v1210 = vld [vmem:[%s3 + $0xc8] sm:$0xff]
        %v1211 = vld [vmem:[%s3 + $0xd0] sm:$0xff]
        %v1212 = vld [vmem:[%s3 + $0xd8] sm:$0xff]
        %v1213 = vld [vmem:[%s3 + $0xe0] sm:$0xff]
        %v1214 = vld [vmem:[%s3 + $0xe8] sm:$0xff]
        %v1215 = vld [vmem:[%s3 + $0xf0] sm:$0xff]
        %v1216 = vld [vmem:[%s3 + $0xf8] sm:$0xff]
        %v1217 = vld [vmem:[%s4] sm:$0xff]
        %v1218 = vld [vmem:[%s4 + $0x8] sm:$0xff]
        %v1219 = vld [vmem:[%s4 + $0x10] sm:$0xff]
        %v1220 = vld [vmem:[%s4 + $0x18] sm:$0xff]
        %v1221 = vld [vmem:[%s4 + $0x20] sm:$0xff]
        %v1222 = vld [vmem:[%s4 + $0x28] sm:$0xff]
        %v1223 = vld [vmem:[%s4 + $0x30] sm:$0xff]
        %v1224 = vld [vmem:[%s4 + $0x38] sm:$0xff]
        %v1225 = vld [vmem:[%s4 + $0x40] sm:$0xff]
        %v1226 = vld [vmem:[%s4 + $0x48] sm:$0xff]
        %v1227 = vld [vmem:[%s4 + $0x50] sm:$0xff]
        %v1228 = vld [vmem:[%s4 + $0x58] sm:$0xff]
        %v1229 = vld [vmem:[%s4 + $0x60] sm:$0xff]
        %v1230 = vld [vmem:[%s4 + $0x68] sm:$0xff]
        %v1231 = vld [vmem:[%s4 + $0x70] sm:$0xff]
        %v1232 = vld [vmem:[%s4 + $0x78] sm:$0xff]
        %1234 = vset.pattern.permute.xlu0 0
        %1235 = vperm.xlu0 %1234, %v1217
        %v1236 = vpop.permute.xlu0 %1235
        %1239 = vset.pattern.permute.xlu0 0
        %1240 = vperm.xlu0 %1239, %v1218
        %v1241 = vpop.permute.xlu0 %1240
        %1244 = vset.pattern.permute.xlu0 0
        %1245 = vperm.xlu0 %1244, %v1219
        %v1246 = vpop.permute.xlu0 %1245
        %1249 = vset.pattern.permute.xlu0 0
        %1250 = vperm.xlu0 %1249, %v1220
        %v1251 = vpop.permute.xlu0 %1250
        %1254 = vset.pattern.permute.xlu0 0
        %1255 = vperm.xlu0 %1254, %v1221
        %v1256 = vpop.permute.xlu0 %1255
        %1259 = vset.pattern.permute.xlu0 0
        %1260 = vperm.xlu0 %1259, %v1222
        %v1261 = vpop.permute.xlu0 %1260
        %1264 = vset.pattern.permute.xlu0 0
        %1265 = vperm.xlu0 %1264, %v1223
        %v1266 = vpop.permute.xlu0 %1265
        %1269 = vset.pattern.permute.xlu0 0
        %1270 = vperm.xlu0 %1269, %v1224
        %v1271 = vpop.permute.xlu0 %1270
        %1274 = vset.pattern.permute.xlu0 0
        %1275 = vperm.xlu0 %1274, %v1225
        %v1276 = vpop.permute.xlu0 %1275
        %1279 = vset.pattern.permute.xlu0 0
        %1280 = vperm.xlu0 %1279, %v1226
        %v1281 = vpop.permute.xlu0 %1280
        %1284 = vset.pattern.permute.xlu0 0
        %1285 = vperm.xlu0 %1284, %v1227
        %v1286 = vpop.permute.xlu0 %1285
        %1289 = vset.pattern.permute.xlu0 0
        %1290 = vperm.xlu0 %1289, %v1228
        %v1291 = vpop.permute.xlu0 %1290
        %1294 = vset.pattern.permute.xlu0 0
        %1295 = vperm.xlu0 %1294, %v1229
        %v1296 = vpop.permute.xlu0 %1295
        %1299 = vset.pattern.permute.xlu0 0
        %1300 = vperm.xlu0 %1299, %v1230
        %v1301 = vpop.permute.xlu0 %1300
        %1304 = vset.pattern.permute.xlu0 0
        %1305 = vperm.xlu0 %1304, %v1231
        %v1306 = vpop.permute.xlu0 %1305
        %1309 = vset.pattern.permute.xlu0 0
        %1310 = vperm.xlu0 %1309, %v1232
        %v1311 = vpop.permute.xlu0 %1310
        %1313 = vmatprep.subr.mxu0 0.0
        %1314 = vmatpush1.msra.mxu0 %v1153
        %1315 = vmatprep.subr.mxu0 0.0
        %1316 = vmatpush1.msra.mxu0 %v1154
        %1317 = vmatprep.subr.mxu0 0.0
        %1318 = vmatpush1.msra.mxu0 %v1155
        %1319 = vmatprep.subr.mxu0 0.0
        %1320 = vmatpush1.msra.mxu0 %v1156
        %1321 = vmatprep.subr.mxu0 0.0
        %1322 = vmatpush1.msra.mxu0 %v1157
        %1323 = vmatprep.subr.mxu0 0.0
        %1324 = vmatpush1.msra.mxu0 %v1158
        %1325 = vmatprep.subr.mxu0 0.0
        %1326 = vmatpush1.msra.mxu0 %v1159
        %1327 = vmatprep.subr.mxu0 0.0
        %1328 = vmatpush1.msra.mxu0 %v1160
        %1329 = vmatprep.subr.mxu0 0.0
        %1330 = vmatpush1.msra.mxu0 %v1161
        %1331 = vmatprep.subr.mxu0 0.0
        %1332 = vmatpush1.msra.mxu0 %v1162
        %1333 = vmatprep.subr.mxu0 0.0
        %1334 = vmatpush1.msra.mxu0 %v1163
        %1335 = vmatprep.subr.mxu0 0.0
        %1336 = vmatpush1.msra.mxu0 %v1164
        %1337 = vmatprep.subr.mxu0 0.0
        %1338 = vmatpush1.msra.mxu0 %v1165
        %1339 = vmatprep.subr.mxu0 0.0
        %1340 = vmatpush1.msra.mxu0 %v1166
        %1341 = vmatprep.subr.mxu0 0.0
        %1342 = vmatpush1.msra.mxu0 %v1167
        %1343 = vmatprep.subr.mxu0 0.0
        %1344 = vmatpush1.msra.mxu0 %v1168
        %1345 = vmatprep.subr.mxu0 0.0
        %1346 = vmatpush1.msra.mxu0 %v1169
        %1347 = vmatprep.subr.mxu0 0.0
        %1348 = vmatpush1.msra.mxu0 %v1170
        %1349 = vmatprep.subr.mxu0 0.0
        %1350 = vmatpush1.msra.mxu0 %v1171
        %1351 = vmatprep.subr.mxu0 0.0
        %1352 = vmatpush1.msra.mxu0 %v1172
        %1353 = vmatprep.subr.mxu0 0.0
        %1354 = vmatpush1.msra.mxu0 %v1173
        %1355 = vmatprep.subr.mxu0 0.0
        %1356 = vmatpush1.msra.mxu0 %v1174
        %1357 = vmatprep.subr.mxu0 0.0
        %1358 = vmatpush1.msra.mxu0 %v1175
        %1359 = vmatprep.subr.mxu0 0.0
        %1360 = vmatpush1.msra.mxu0 %v1176
        %1361 = vmatprep.subr.mxu0 0.0
        %1362 = vmatpush1.msra.mxu0 %v1177
        %1363 = vmatprep.subr.mxu0 0.0
        %1364 = vmatpush1.msra.mxu0 %v1178
        %1365 = vmatprep.subr.mxu0 0.0
        %1366 = vmatpush1.msra.mxu0 %v1179
        %1367 = vmatprep.subr.mxu0 0.0
        %1368 = vmatpush1.msra.mxu0 %v1180
        %1369 = vmatprep.subr.mxu0 0.0
        %1370 = vmatpush1.msra.mxu0 %v1181
        %1371 = vmatprep.subr.mxu0 0.0
        %1372 = vmatpush1.msra.mxu0 %v1182
        %1373 = vmatprep.subr.mxu0 0.0
        %1374 = vmatpush1.msra.mxu0 %v1183
        %1375 = vmatprep.subr.mxu0 0.0
        %1376 = vmatpush1.msra.mxu0 %v1184
        %1377 = vmatprep.mubr.f32.mxu0 %v1186
        %1378 = vmatmul.mubr.f32.gmra.mrb[0].mxu0 %v1185
        %v1379 = vpop.f32.mrb[0].mxu0
        %v1380 = vadd.f32 %v1236, %v1379
        %v1381 = vpop.f32.mrb[0].mxu0
        %1382 = vmatprep.mubr.f32.mxu0 %v1188
        %1383 = vmatmul.mubr.f32.gmra.mrb[0].mxu0 %v1187
        %v1384 = vpop.f32.mrb[0].mxu0
        %v1385 = vadd.f32 %v1241, %v1384
        %v1386 = vpop.f32.mrb[0].mxu0
        %1387 = vmatprep.mubr.f32.mxu0 %v1190
        %1388 = vmatmul.mubr.f32.gmra.mrb[0].mxu0 %v1189
        %v1389 = vpop.f32.mrb[0].mxu0
        %v1390 = vadd.f32 %v1246, %v1389
        %v1391 = vpop.f32.mrb[0].mxu0
        %1392 = vmatprep.mubr.f32.mxu0 %v1192
        %1393 = vmatmul.mubr.f32.gmra.mrb[0].mxu0 %v1191
        %v1394 = vpop.f32.mrb[0].mxu0
        %v1395 = vadd.f32 %v1251, %v1394
        %v1396 = vpop.f32.mrb[0].mxu0
        %1397 = vmatprep.mubr.f32.mxu0 %v1194
        %1398 = vmatmul.mubr.f32.gmra.mrb[0].mxu0 %v1193
        %v1399 = vpop.f32.mrb[0].mxu0
        %v1400 = vadd.f32 %v1256, %v1399
        %v1401 = vpop.f32.mrb[0].mxu0
        %1402 = vmatprep.mubr.f32.mxu0 %v1196
        %1403 = vmatmul.mubr.f32.gmra.mrb[0].mxu0 %v1195
        %v1404 = vpop.f32.mrb[0].mxu0
        %v1405 = vadd.f32 %v1261, %v1404
        %v1406 = vpop.f32.mrb[0].mxu0
        %1407 = vmatprep.mubr.f32.mxu0 %v1198
        %1408 = vmatmul.mubr.f32.gmra.mrb[0].mxu0 %v1197
        %v1409 = vpop.f32.mrb[0].mxu0
        %v1410 = vadd.f32 %v1266, %v1409
        %v1411 = vpop.f32.mrb[0].mxu0
        %1412 = vmatprep.mubr.f32.mxu0 %v1200
        %1413 = vmatmul.mubr.f32.gmra.mrb[0].mxu0 %v1199
        %v1414 = vpop.f32.mrb[0].mxu0
        %v1415 = vadd.f32 %v1271, %v1414
        %v1416 = vpop.f32.mrb[0].mxu0
        %1417 = vmatprep.mubr.f32.mxu0 %v1202
        %1418 = vmatmul.mubr.f32.gmra.mrb[0].mxu0 %v1201
        %v1419 = vpop.f32.mrb[0].mxu0
        %v1420 = vadd.f32 %v1276, %v1419
        %v1421 = vpop.f32.mrb[0].mxu0
        %1422 = vmatprep.mubr.f32.mxu0 %v1204
        %1423 = vmatmul.mubr.f32.gmra.mrb[0].mxu0 %v1203
        %v1424 = vpop.f32.mrb[0].mxu0
        %v1425 = vadd.f32 %v1281, %v1424
        %v1426 = vpop.f32.mrb[0].mxu0
        %1427 = vmatprep.mubr.f32.mxu0 %v1206
        %1428 = vmatmul.mubr.f32.gmra.mrb[0].mxu0 %v1205
        %v1429 = vpop.f32.mrb[0].mxu0
        %v1430 = vadd.f32 %v1286, %v1429
        %v1431 = vpop.f32.mrb[0].mxu0
        %1432 = vmatprep.mubr.f32.mxu0 %v1208
        %1433 = vmatmul.mubr.f32.gmra.mrb[0].mxu0 %v1207
        %v1434 = vpop.f32.mrb[0].mxu0
        %v1435 = vadd.f32 %v1291, %v1434
        %v1436 = vpop.f32.mrb[0].mxu0
        %1437 = vmatprep.mubr.f32.mxu0 %v1210
        %1438 = vmatmul.mubr.f32.gmra.mrb[0].mxu0 %v1209
        %v1439 = vpop.f32.mrb[0].mxu0
        %v1440 = vadd.f32 %v1296, %v1439
        %v1441 = vpop.f32.mrb[0].mxu0
        %1442 = vmatprep.mubr.f32.mxu0 %v1212
        %1443 = vmatmul.mubr.f32.gmra.mrb[0].mxu0 %v1211
        %v1444 = vpop.f32.mrb[0].mxu0
        %v1445 = vadd.f32 %v1301, %v1444
        %v1446 = vpop.f32.mrb[0].mxu0
        %1447 = vmatprep.mubr.f32.mxu0 %v1214
        %1448 = vmatmul.mubr.f32.gmra.mrb[0].mxu0 %v1213
        %v1449 = vpop.f32.mrb[0].mxu0
        %v1450 = vadd.f32 %v1306, %v1449
        %v1451 = vpop.f32.mrb[0].mxu0
        %1452 = vmatprep.mubr.f32.mxu0 %v1216
        %1453 = vmatmul.mubr.f32.gmra.mrb[0].mxu0 %v1215
        %v1454 = vpop.f32.mrb[0].mxu0
        %v1455 = vadd.f32 %v1311, %v1454
        %v1456 = vpop.f32.mrb[0].mxu0
        %1457 = vdwg.mxu0
        %v1458 = vmax.f32 %v1380, 0.0
        %v1459 = vmax.f32 %v1385, 0.0
        %v1460 = vmax.f32 %v1390, 0.0
        %v1461 = vmax.f32 %v1395, 0.0
        %v1462 = vmax.f32 %v1400, 0.0
        %v1463 = vmax.f32 %v1405, 0.0
        %v1464 = vmax.f32 %v1410, 0.0
        %v1465 = vmax.f32 %v1415, 0.0
        %v1466 = vmax.f32 %v1420, 0.0
        %v1467 = vmax.f32 %v1425, 0.0
        %v1468 = vmax.f32 %v1430, 0.0
        %v1469 = vmax.f32 %v1435, 0.0
        %v1470 = vmax.f32 %v1440, 0.0
        %v1471 = vmax.f32 %v1445, 0.0
        %v1472 = vmax.f32 %v1450, 0.0
        %v1473 = vmax.f32 %v1455, 0.0
        %v1474 = vld [vmem:[%s5] sm:$0x1]
        %v1475 = vld [vmem:[#allocation2] sm:$0x1]
        %1477 = vset.pattern.permute.xlu0 0
        %1478 = vperm.xlu0 %1477, %v1475
        %v1479 = vpop.permute.xlu0 %1478
        %v1481 = vlaneseq
        %v1482 = vshrl.u32 %v1481, 7
        %v1483 = vsub.s32 0, %v1482
        %v1484 = vrot.slane %v1479, %v1483
        %1485 = vmatprep.subr.mxu0 0.0
        %1486 = vmatpush1.msra.mxu0 %v1458
        %1487 = vmatprep.subr.mxu0 0.0
        %1488 = vmatpush1.msra.mxu0 %v1459
        %1489 = vmatprep.subr.mxu0 0.0
        %1490 = vmatpush1.msra.mxu0 %v1460
        %1491 = vmatprep.subr.mxu0 0.0
        %1492 = vmatpush1.msra.mxu0 %v1461
        %1493 = vmatprep.subr.mxu0 0.0
        %1494 = vmatpush1.msra.mxu0 %v1462
        %1495 = vmatprep.subr.mxu0 0.0
        %1496 = vmatpush1.msra.mxu0 %v1463
        %1497 = vmatprep.subr.mxu0 0.0
        %1498 = vmatpush1.msra.mxu0 %v1464
        %1499 = vmatprep.subr.mxu0 0.0
        %1500 = vmatpush1.msra.mxu0 %v1465
        %1501 = vmatprep.subr.mxu0 0.0
        %1502 = vmatpush1.msra.mxu0 %v1466
        %1503 = vmatprep.subr.mxu0 0.0
        %1504 = vmatpush1.msra.mxu0 %v1467
        %1505 = vmatprep.subr.mxu0 0.0
        %1506 = vmatpush1.msra.mxu0 %v1468
        %1507 = vmatprep.subr.mxu0 0.0
        %1508 = vmatpush1.msra.mxu0 %v1469
        %1509 = vmatprep.subr.mxu0 0.0
        %1510 = vmatpush1.msra.mxu0 %v1470
        %1511 = vmatprep.subr.mxu0 0.0
        %1512 = vmatpush1.msra.mxu0 %v1471
        %1513 = vmatprep.subr.mxu0 0.0
        %1514 = vmatpush1.msra.mxu0 %v1472
        %1515 = vmatprep.subr.mxu0 0.0
        %1516 = vmatpush1.msra.mxu0 %v1473
        %1517 = vmatprep.subr.mxu0 0.0
        %1518 = vmatpush1.msra.mxu0 0.0
        %1519 = vmatprep.subr.mxu0 0.0
        %1520 = vmatpush1.msra.mxu0 0.0
        %1521 = vmatprep.subr.mxu0 0.0
        %1522 = vmatpush1.msra.mxu0 0.0
        %1523 = vmatprep.subr.mxu0 0.0
        %1524 = vmatpush1.msra.mxu0 0.0
        %1525 = vmatprep.subr.mxu0 0.0
        %1526 = vmatpush1.msra.mxu0 0.0
        %1527 = vmatprep.subr.mxu0 0.0
        %1528 = vmatpush1.msra.mxu0 0.0
        %1529 = vmatprep.subr.mxu0 0.0
        %1530 = vmatpush1.msra.mxu0 0.0
        %1531 = vmatprep.subr.mxu0 0.0
        %1532 = vmatpush1.msra.mxu0 0.0
        %1533 = vmatprep.subr.mxu0 0.0
        %1534 = vmatpush1.msra.mxu0 0.0
        %1535 = vmatprep.subr.mxu0 0.0
        %1536 = vmatpush1.msra.mxu0 0.0
        %1537 = vmatprep.subr.mxu0 0.0
        %1538 = vmatpush1.msra.mxu0 0.0
        %1539 = vmatprep.subr.mxu0 0.0
        %1540 = vmatpush1.msra.mxu0 0.0
        %1541 = vmatprep.subr.mxu0 0.0
        %1542 = vmatpush1.msra.mxu0 0.0
        %1543 = vmatprep.subr.mxu0 0.0
        %1544 = vmatpush1.msra.mxu0 0.0
        %1545 = vmatprep.subr.mxu0 0.0
        %1546 = vmatpush1.msra.mxu0 0.0
        %1547 = vmatprep.subr.mxu0 0.0
        %1548 = vmatpush1.msra.mxu0 0.0
        %1549 = vmatprep.mubr.f32.mxu0 0.0
        %1550 = vmatmul.mubr.f32.gmra.mrb[0].mxu0 %v1474
        %v1551 = vpop.f32.mrb[0].mxu0
        %v1552 = vadd.f32 %v1484, %v1551
        %v1553 = vpop.f32.mrb[0].mxu0
        %1554 = vdwg.mxu0
        %vm1555 = vcmask 122880
        %v1556 = vsel %vm1555, %v1552, -inf
        %1557 = vmax.xlane.f32.xlu0 %v1556
        %v1558 = vpop.xlane.xlu0 %1557
        %v1559 = vsub.f32 %v1552, %v1558
        %v1560 = vmul.f32 %v1559, 1.442695
        %v1561 = vpow.pop %v1560
        %v1562 = vsel %vm1555, %v1561, 0.0
        %1563 = vadd.xlane.f32.xlu0 %v1562
        %v1564 = vpop.xlane.xlu0 %1563
        %v1565 = vrcp.pop %v1564
        %v1566 = vmul.f32 %v1561, %v1565
        %v1567 = vld [vmem:[%s318] sm:$0x1]
        %v1568 = vmul.f32 %v1566, %v1567
        %1569 = vst.msk [vmem:[%s310] sm:$0x1] %vm1555, %v1568
        %s1570 = sand.u32 %s210, 1
        %s1571 = scalar_lea.sflag [#allocation4], %s1570
        %s1572 = sand.u32 %s210, 1
        %s1573 = scalar_lea.vmem [#allocation3], %s1572
        // Predicated region
        $region53: #{tpu_custom_call.1} parent=51 // pred_check
          %p1574 = pneg %p220
        $region54: #{tpu_custom_call.1} parent=51 // pred_check_branch
          %1576 = sbr.rel (%p1574) target = $region56
        $region55: #{tpu_custom_call.1} parent=51 // pred_region
          %s1578 = ssub.s32 16, 16
          %1579 = vsyncadd %s1571, %s1578
          %s1580 = smul.addr %s24, 16
          %s1581 = scalar_lea.hbm %s8, %s1580
          %s1583 = sshll.u32 %s1573, 4
          %s1584 = int_to_ptr.vmem [resolvable:$true] %s1583
          %1586 = dma.vmem_to_hbm [thread:$0]  %s1584, 16, %s1581, %s1571
        $region56: #{tpu_custom_call.1} parent=51 // pred_fallthru
          _
      $region52: #{tpu_custom_call.1} parent=5 // pred_fallthru
        _
      %p1587 = scmp.le.s32.totalorder 2, %s19
      // Predicated region
      $region57: #{tpu_custom_call.1} parent=5 // pred_check
        %p1588 = pneg %p1587
      $region58: #{tpu_custom_call.1} parent=5 // pred_check_branch
        %1590 = sbr.rel (%p1588) target = $region60
      $region59: #{tpu_custom_call.1} parent=5 // pred_region
        %s1591 = ssub.s32 %s19, 2
        // Predicated region
        $region61: #{tpu_custom_call.1} parent=59 // pred_check
          %p1592 = pneg %p226
        $region62: #{tpu_custom_call.1} parent=59 // pred_check_branch
          %1594 = sbr.rel (%p1592) target = $region64
        $region63: #{tpu_custom_call.1} parent=59 // pred_region
          %s1595 = sand.u32 %s211, 1
          %s1596 = scalar_lea.sflag [#allocation4], %s1595
          %s1597 = sand.u32 %s211, 1
          %s1598 = scalar_lea.vmem [#allocation3], %s1597
          %1599 = dma.done %s1596, 16
        $region64: #{tpu_custom_call.1} parent=59 // pred_fallthru
          _
      $region60: #{tpu_custom_call.1} parent=5 // pred_fallthru
        _
    $region6: #{tpu_custom_call.1} parent=1 // loop_footer
      %s23 = sadd.s32 1, %s19
    $region7: #{tpu_custom_call.1} parent=1 // loop_footer_branch
      %18 = sbr.rel target = $region3
    $region8: #{tpu_custom_call.1} parent=1 // loop_exit
      _
    %1600 = vsyncpa [#allocation4], 1
    %s1601 = scalar_lea.sflag [#allocation4], 1
    %1602 = vsyncpa %s1601, 1

</llo_original>
